<compile_context>
chip_gen: v5e
topology: v5e:2x2
jax: 0.10.0
libtpu: 0.0.40
codegen_flags: <defaults>
</compile_context>

<pallas_src>
import jax
import jax.numpy as jnp
from jax.experimental import pallas as pl
from jax.experimental.pallas import tpu as pltpu

LN_EPS = 1e-5  # torch.nn.LayerNorm default


# ---------------------------------------------------------------------------
# Fused kernel:  gather(x, mask)  ->  LayerNorm  ->  @ proj
#
#   mask_ref  : SMEM (N,)  int32          (scalar prefetch)
#   x_hbm     : HBM  (N, L, D)            (memory_space=pl.ANY, manual gather)
#   gamma_ref : VMEM (1, D)
#   beta_ref  : VMEM (1, D)
#   proj_ref  : VMEM (D, E)               (resident across grid steps)
#   out_ref   : VMEM (TM, E)
#   rows_ref  : VMEM (2, TM, D)           double-buffered gathered rows
#   copy_sems : DMA semaphores (2,)       one shared semaphore per buffer slot
# ---------------------------------------------------------------------------
def _gather_ln_proj_kernel(mask_ref, x_hbm, gamma_ref, beta_ref, proj_ref,
                           out_ref, rows_ref, copy_sems):
    c = pl.program_id(0)            # "parallel" outer axis (megacore split)
    j = pl.program_id(1)            # "arbitrary" inner axis (pipeline axis)
    nj = pl.num_programs(1)

    n = mask_ref.shape[0]
    seq_len = x_hbm.shape[1]
    _, tm, _ = rows_ref.shape

    def issue_tile_gather(tile_idx, slot):
        """Start TM row DMAs: x[b, mask[b], :] -> rows_ref[slot, r, :]."""
        base = tile_idx * tm
        for r in range(tm):                           # static unroll (one start per row)
            b = jnp.minimum(base + r, n - 1)          # clamp rows of a partial last tile
            t = jnp.clip(mask_ref[b], 0, seq_len - 1)  # guard out-of-range token index
            pltpu.make_async_copy(
                x_hbm.at[b, pl.ds(t, 1), :],          # (1, D) row in HBM
                rows_ref.at[slot, pl.ds(r, 1), :],    # (1, D) slot in VMEM
                copy_sems.at[slot],                   # shared per-slot semaphore
            ).start()

    cur = j % 2

    # Prime the pipeline on the first step of this core's chunk.
    @pl.when(j == 0)
    def _():
        issue_tile_gather(c * nj, 0)

    # Prefetch the next tile's rows; overlaps with this tile's LN + matmul.
    @pl.when(j + 1 < nj)
    def _():
        issue_tile_gather(c * nj + j + 1, 1 - cur)

    # Single aggregate wait: the TM row copies above all signal copy_sems[cur]
    # and add up to exactly one (TM, D) buffer worth of bytes.
    pltpu.make_async_copy(
        rows_ref.at[cur], rows_ref.at[cur], copy_sems.at[cur]
    ).wait()

    # LayerNorm in f32 with single-pass statistics, then cast back to the
    # activation dtype (matches torch: self.ln(x).type(dtype)).
    xg = rows_ref[cur].astype(jnp.float32)                       # (TM, D)
    mean = jnp.mean(xg, axis=-1, keepdims=True)
    mean_sq = jnp.mean(xg * xg, axis=-1, keepdims=True)
    inv = jax.lax.rsqrt(mean_sq - mean * mean + LN_EPS)
    y = (xg - mean) * inv
    y = y * gamma_ref[...].astype(jnp.float32) + beta_ref[...].astype(jnp.float32)
    y = y.astype(rows_ref.dtype)

    # Projection on the MXU (activation-dtype operands, f32 accumulation).
    out_ref[...] = jnp.dot(
        y, proj_ref[...], preferred_element_type=jnp.float32
    ).astype(out_ref.dtype)


def gather_ln_proj(x, mask, gamma, beta, proj, *, tm=128, out_dtype=None):
    """out[i] = LayerNorm(x[i, mask[i], :]).astype(x.dtype) @ proj  for i in range(N)."""
    n, seq, d = x.shape
    dp, e = proj.shape
    assert dp == d, (dp, d)
    if out_dtype is None:
        out_dtype = x.dtype                 # match PyTorch: result follows activation dtype

    proj = proj.astype(x.dtype)             # bf16 activations -> bf16 MXU weights
    mask = mask.astype(jnp.int32)

    # ---- tile selection --------------------------------------------------
    if tm >= n:
        tm = n                              # one tile covers the whole batch
    else:
        tm = max(8, (min(tm, n) // 8) * 8)  # sublane-aligned tile (< n)
    total_tiles = pl.cdiv(n, tm)

    # Prefer an even tile count so the outer "parallel" axis can split across
    # v7x's two TensorCores without redundant tiles (no-op on v5e/v6e).
    if total_tiles > 1 and total_tiles % 2 == 1:
        for cand in range(tm - 8, max(8, tm // 2) - 1, -8):
            if pl.cdiv(n, cand) % 2 == 0:
                tm = cand
                total_tiles = pl.cdiv(n, cand)
                break
    nc = 2 if (total_tiles > 1 and total_tiles % 2 == 0) else 1
    nj = total_tiles // nc

    # ---- VMEM budget (double-buffered gather, resident proj, out buffers) --
    act_bytes = jnp.dtype(x.dtype).itemsize
    out_bytes = jnp.dtype(out_dtype).itemsize
    ln_bytes = jnp.dtype(gamma.dtype).itemsize
    vmem_need = (2 * tm * d * act_bytes          # gather double buffer (scratch)
                 + 2 * d * e * act_bytes         # proj (pipeline double-buffers it)
                 + 2 * tm * e * out_bytes        # output double buffer
                 + 4 * d * ln_bytes)             # gamma / beta
    vmem_limit = int(min(max(2 * vmem_need, 32 * 1024 * 1024), 120 * 1024 * 1024))

    return pl.pallas_call(
        _gather_ln_proj_kernel,
        out_shape=jax.ShapeDtypeStruct((n, e), out_dtype),
        grid_spec=pltpu.PrefetchScalarGridSpec(
            num_scalar_prefetch=1,                               # mask -> SMEM
            grid=(nc, nj),
            in_specs=[
                pl.BlockSpec(memory_space=pl.ANY),               # x stays in HBM
                pl.BlockSpec((1, d), lambda c, j, m: (0, 0)),    # gamma (resident)
                pl.BlockSpec((1, d), lambda c, j, m: (0, 0)),    # beta  (resident)
                pl.BlockSpec((d, e), lambda c, j, m: (0, 0)),    # proj  (resident)
            ],
            out_specs=pl.BlockSpec((tm, e), lambda c, j, m: (c * nj + j, 0)),
            scratch_shapes=[
                pltpu.VMEM((2, tm, d), x.dtype),                 # double-buffered rows
                pltpu.SemaphoreType.DMA((2,)),                   # one sem per slot
            ],
        ),
        compiler_params=pltpu.CompilerParams(
            dimension_semantics=("parallel", "arbitrary"),       # megacore x pipeline
            vmem_limit_bytes=vmem_limit,
        ),
    )(mask, x, gamma, beta, proj)


# ---------------------------------------------------------------------------
# Module wrapper (mirrors GPTPostEncoder)
# ---------------------------------------------------------------------------
class GPTPostEncoderPallas:
    def __init__(self, key, width=512, embed_dim=512):
        self.width = width
        self.embed_dim = embed_dim
        scale = width ** (-0.5)
        # LayerNorm parameters (torch default init: weight=1, bias=0)
        self.ln_gamma = jnp.ones((1, width), dtype=jnp.float32)
        self.ln_beta = jnp.zeros((1, width), dtype=jnp.float32)
        # proj = scale * randn(width, embed_dim); cast to activation dtype at call time
        self.proj = (scale * jax.random.normal(key, (width, embed_dim))).astype(jnp.float32)

    def __call__(self, x, mask=None, positional_embedding=None, class_embedding=None,
                 tm=128, **kwargs):
        # x: (N, L, width); mask: (N,) int index of the token to project per batch row.
        n = x.shape[0]
        if mask is None:
            mask = jnp.zeros((n,), dtype=jnp.int32)
        return gather_ln_proj(x, mask, self.ln_gamma, self.ln_beta, self.proj, tm=tm)


# ---------------------------------------------------------------------------
# Pure-JAX reference for the correctness check
# ---------------------------------------------------------------------------
def _ref_forward(x, mask, gamma, beta, proj):
    xf = x.astype(jnp.float32)
    mean = jnp.mean(xf, axis=-1, keepdims=True)
    var = jnp.mean((xf - mean) ** 2, axis=-1, keepdims=True)
    xn = (xf - mean) * jax.lax.rsqrt(var + LN_EPS)
    y = (xn * gamma[0].astype(jnp.float32) + beta[0].astype(jnp.float32)).astype(x.dtype)
    g = y[jnp.arange(x.shape[0]), mask]
    return g @ proj


if __name__ == "__main__":
    key = jax.random.PRNGKey(0)
    k_param, k_x, k_mask = jax.random.split(key, 3)

    # Small shapes; tm=8 forces a (2, 2) grid -> exercises the megacore split,
    # pipeline priming, cross-step prefetch, row clamping and a partial out block.
    N, L, WIDTH, EMBED = 30, 10, 128, 128

    model = GPTPostEncoderPallas(k_param, width=WIDTH, embed_dim=EMBED)
    mask = jax.random.randint(k_mask, (N,), 0, L, dtype=jnp.int32)

    # --- f32 path (strict check) ---
    x = jax.random.normal(k_x, (N, L, WIDTH), dtype=jnp.float32)
    out = jax.block_until_ready(model(x, mask, tm=8))
    assert out.shape == (N, EMBED), out.shape
    assert out.dtype == x.dtype, out.dtype
    ref = _ref_forward(x, mask, model.ln_gamma, model.ln_beta,
                       model.proj.astype(x.dtype))
    assert jnp.allclose(out, ref, atol=1e-4, rtol=1e-4), "f32 mismatch vs reference"

    # --- bf16 path (bf16 MXU operands + bf16 output; loose tolerance) ---
    xb = x.astype(jnp.bfloat16)
    outb = jax.block_until_ready(model(xb, mask, tm=8))
    assert outb.dtype == jnp.bfloat16, outb.dtype
    refb = _ref_forward(xb, mask, model.ln_gamma, model.ln_beta,
                        model.proj.astype(jnp.bfloat16))
    assert jnp.allclose(outb.astype(jnp.float32), refb.astype(jnp.float32),
                        atol=5e-2, rtol=5e-2), "bf16 mismatch vs reference"

    print("KERNEL_OK")
</pallas_src>

<mosaic_0001>
module attributes {stable_mosaic.version = 11 : i64} {
  func.func @_gather_ln_proj_kernel(%arg0: i32, %arg1: i32, %arg2: memref<30xi32, #tpu.memory_space<smem>>, %arg3: memref<30x10x128xf32, #tpu.memory_space<any>>, %arg4: memref<1x128xf32, #tpu.memory_space<vmem>>, %arg5: memref<1x128xf32, #tpu.memory_space<vmem>>, %arg6: memref<128x128xf32, #tpu.memory_space<vmem>>, %arg7: memref<8x128xf32, #tpu.memory_space<vmem>>, %arg8: memref<2x8x128xf32, #tpu.memory_space<vmem>>, %arg9: memref<2x!tpu.dma_semaphore, #tpu.memory_space<semaphore_mem>>) attributes {dimension_semantics = [#tpu.dimension_semantics<parallel>, #tpu.dimension_semantics<arbitrary>], iteration_bounds = array<i64: 2, 2>, scalar_prefetch = 1 : i64, scratch_operands = 2 : i64, tpu.core_type = #tpu.core_type<tc>, window_params = [{}, {pipeline_mode = #tpu.pipeline_mode<synchronous>, transform_indices = @transform_1, window_bounds = array<i64: 1, 128>}, {pipeline_mode = #tpu.pipeline_mode<synchronous>, transform_indices = @transform_2, window_bounds = array<i64: 1, 128>}, {pipeline_mode = #tpu.pipeline_mode<synchronous>, transform_indices = @transform_3, window_bounds = array<i64: 128, 128>}, {transform_indices = @transform_4, window_bounds = array<i64: 8, 128>}]} {
    %c2_i32 = arith.constant 2 : i32
    %c0_i32 = arith.constant 0 : i32
    %0 = arith.cmpi eq, %c2_i32, %c0_i32 : i32
    %c1_i32 = arith.constant 1 : i32
    %1 = arith.select %0, %c1_i32, %c2_i32 : i32
    %2 = arith.remsi %arg1, %1 : i32
    %c0_i32_0 = arith.constant 0 : i32
    %3 = arith.cmpi ne, %2, %c0_i32_0 : i32
    %c0_i32_1 = arith.constant 0 : i32
    %4 = arith.cmpi slt, %2, %c0_i32_1 : i32
    %c0_i32_2 = arith.constant 0 : i32
    %5 = arith.cmpi slt, %1, %c0_i32_2 : i32
    %6 = arith.xori %4, %5 : i1
    %7 = arith.andi %6, %3 : i1
    %8 = arith.addi %2, %1 : i32
    %9 = arith.select %7, %8, %2 : i32
    %c0_i32_3 = arith.constant 0 : i32
    %10 = arith.cmpi eq, %arg1, %c0_i32_3 : i32
    %11 = arith.extui %10 : i1 to i32
    %c0_i32_4 = arith.constant 0 : i32
    %12 = arith.cmpi ne, %11, %c0_i32_4 : i32
    scf.if %12 {
      %c2_i32_26 = arith.constant 2 : i32
      %53 = arith.muli %arg0, %c2_i32_26 : i32
      %c8_i32 = arith.constant 8 : i32
      %54 = arith.muli %53, %c8_i32 : i32
      %c0_i32_27 = arith.constant 0 : i32
      %55 = arith.addi %54, %c0_i32_27 : i32
      %c29_i32 = arith.constant 29 : i32
      %56 = arith.minsi %55, %c29_i32 : i32
      %57 = arith.index_cast %56 : i32 to index
      %58 = memref.load %arg2[%57] : memref<30xi32, #tpu.memory_space<smem>>
      %c0_i32_28 = arith.constant 0 : i32
      %c9_i32 = arith.constant 9 : i32
      %59 = arith.maxsi %c0_i32_28, %58 : i32
      %60 = arith.minsi %c9_i32, %59 : i32
      %c0_i32_29 = arith.constant 0 : i32
      %c0_i32_30 = arith.constant 0 : i32
      %c0_i32_31 = arith.constant 0 : i32
      %61 = tpu.memref_slice %arg3[%56, %60, %c0_i32_31] : memref<30x10x128xf32, #tpu.memory_space<any>> -> memref<1x1x128xf32, #tpu.memory_space<any>>
      %62 = tpu.memref_squeeze %61 : memref<1x1x128xf32, #tpu.memory_space<any>> -> memref<1x128xf32, #tpu.memory_space<any>>
      %c0_i32_32 = arith.constant 0 : i32
      %c0_i32_33 = arith.constant 0 : i32
      %63 = tpu.memref_slice %arg8[%c0_i32_29, %c0_i32_32, %c0_i32_33] : memref<2x8x128xf32, #tpu.memory_space<vmem>> -> memref<1x1x128xf32, #tpu.memory_space<vmem>>
      %64 = tpu.memref_squeeze %63 : memref<1x1x128xf32, #tpu.memory_space<vmem>> -> memref<1x128xf32, #tpu.memory_space<vmem>>
      %65 = tpu.memref_slice %arg9[%c0_i32_30] : memref<2x!tpu.dma_semaphore, #tpu.memory_space<semaphore_mem>> -> memref<1x!tpu.dma_semaphore, #tpu.memory_space<semaphore_mem>>
      %66 = tpu.memref_squeeze %65 : memref<1x!tpu.dma_semaphore, #tpu.memory_space<semaphore_mem>> -> memref<!tpu.dma_semaphore, #tpu.memory_space<semaphore_mem>>
      tpu.enqueue_dma source(%62 : memref<1x128xf32, #tpu.memory_space<any>>) target(%64 : memref<1x128xf32, #tpu.memory_space<vmem>>) target_semaphore(%66 : memref<!tpu.dma_semaphore, #tpu.memory_space<semaphore_mem>>)
      %c1_i32_34 = arith.constant 1 : i32
      %67 = arith.addi %54, %c1_i32_34 : i32
      %c29_i32_35 = arith.constant 29 : i32
      %68 = arith.minsi %67, %c29_i32_35 : i32
      %69 = arith.index_cast %68 : i32 to index
      %70 = memref.load %arg2[%69] : memref<30xi32, #tpu.memory_space<smem>>
      %c0_i32_36 = arith.constant 0 : i32
      %c9_i32_37 = arith.constant 9 : i32
      %71 = arith.maxsi %c0_i32_36, %70 : i32
      %72 = arith.minsi %c9_i32_37, %71 : i32
      %c0_i32_38 = arith.constant 0 : i32
      %c0_i32_39 = arith.constant 0 : i32
      %c0_i32_40 = arith.constant 0 : i32
      %73 = tpu.memref_slice %arg3[%68, %72, %c0_i32_40] : memref<30x10x128xf32, #tpu.memory_space<any>> -> memref<1x1x128xf32, #tpu.memory_space<any>>
      %74 = tpu.memref_squeeze %73 : memref<1x1x128xf32, #tpu.memory_space<any>> -> memref<1x128xf32, #tpu.memory_space<any>>
      %c1_i32_41 = arith.constant 1 : i32
      %c0_i32_42 = arith.constant 0 : i32
      %75 = tpu.memref_slice %arg8[%c0_i32_38, %c1_i32_41, %c0_i32_42] : memref<2x8x128xf32, #tpu.memory_space<vmem>> -> memref<1x1x128xf32, #tpu.memory_space<vmem>>
      %76 = tpu.memref_squeeze %75 : memref<1x1x128xf32, #tpu.memory_space<vmem>> -> memref<1x128xf32, #tpu.memory_space<vmem>>
      %77 = tpu.memref_slice %arg9[%c0_i32_39] : memref<2x!tpu.dma_semaphore, #tpu.memory_space<semaphore_mem>> -> memref<1x!tpu.dma_semaphore, #tpu.memory_space<semaphore_mem>>
      %78 = tpu.memref_squeeze %77 : memref<1x!tpu.dma_semaphore, #tpu.memory_space<semaphore_mem>> -> memref<!tpu.dma_semaphore, #tpu.memory_space<semaphore_mem>>
      tpu.enqueue_dma source(%74 : memref<1x128xf32, #tpu.memory_space<any>>) target(%76 : memref<1x128xf32, #tpu.memory_space<vmem>>) target_semaphore(%78 : memref<!tpu.dma_semaphore, #tpu.memory_space<semaphore_mem>>)
      %c2_i32_43 = arith.constant 2 : i32
      %79 = arith.addi %54, %c2_i32_43 : i32
      %c29_i32_44 = arith.constant 29 : i32
      %80 = arith.minsi %79, %c29_i32_44 : i32
      %81 = arith.index_cast %80 : i32 to index
      %82 = memref.load %arg2[%81] : memref<30xi32, #tpu.memory_space<smem>>
      %c0_i32_45 = arith.constant 0 : i32
      %c9_i32_46 = arith.constant 9 : i32
      %83 = arith.maxsi %c0_i32_45, %82 : i32
      %84 = arith.minsi %c9_i32_46, %83 : i32
      %c0_i32_47 = arith.constant 0 : i32
      %c0_i32_48 = arith.constant 0 : i32
      %c0_i32_49 = arith.constant 0 : i32
      %85 = tpu.memref_slice %arg3[%80, %84, %c0_i32_49] : memref<30x10x128xf32, #tpu.memory_space<any>> -> memref<1x1x128xf32, #tpu.memory_space<any>>
      %86 = tpu.memref_squeeze %85 : memref<1x1x128xf32, #tpu.memory_space<any>> -> memref<1x128xf32, #tpu.memory_space<any>>
      %c2_i32_50 = arith.constant 2 : i32
      %c0_i32_51 = arith.constant 0 : i32
      %87 = tpu.memref_slice %arg8[%c0_i32_47, %c2_i32_50, %c0_i32_51] : memref<2x8x128xf32, #tpu.memory_space<vmem>> -> memref<1x1x128xf32, #tpu.memory_space<vmem>>
      %88 = tpu.memref_squeeze %87 : memref<1x1x128xf32, #tpu.memory_space<vmem>> -> memref<1x128xf32, #tpu.memory_space<vmem>>
      %89 = tpu.memref_slice %arg9[%c0_i32_48] : memref<2x!tpu.dma_semaphore, #tpu.memory_space<semaphore_mem>> -> memref<1x!tpu.dma_semaphore, #tpu.memory_space<semaphore_mem>>
      %90 = tpu.memref_squeeze %89 : memref<1x!tpu.dma_semaphore, #tpu.memory_space<semaphore_mem>> -> memref<!tpu.dma_semaphore, #tpu.memory_space<semaphore_mem>>
      tpu.enqueue_dma source(%86 : memref<1x128xf32, #tpu.memory_space<any>>) target(%88 : memref<1x128xf32, #tpu.memory_space<vmem>>) target_semaphore(%90 : memref<!tpu.dma_semaphore, #tpu.memory_space<semaphore_mem>>)
      %c3_i32 = arith.constant 3 : i32
      %91 = arith.addi %54, %c3_i32 : i32
      %c29_i32_52 = arith.constant 29 : i32
      %92 = arith.minsi %91, %c29_i32_52 : i32
      %93 = arith.index_cast %92 : i32 to index
      %94 = memref.load %arg2[%93] : memref<30xi32, #tpu.memory_space<smem>>
      %c0_i32_53 = arith.constant 0 : i32
      %c9_i32_54 = arith.constant 9 : i32
      %95 = arith.maxsi %c0_i32_53, %94 : i32
      %96 = arith.minsi %c9_i32_54, %95 : i32
      %c0_i32_55 = arith.constant 0 : i32
      %c0_i32_56 = arith.constant 0 : i32
      %c0_i32_57 = arith.constant 0 : i32
      %97 = tpu.memref_slice %arg3[%92, %96, %c0_i32_57] : memref<30x10x128xf32, #tpu.memory_space<any>> -> memref<1x1x128xf32, #tpu.memory_space<any>>
      %98 = tpu.memref_squeeze %97 : memref<1x1x128xf32, #tpu.memory_space<any>> -> memref<1x128xf32, #tpu.memory_space<any>>
      %c3_i32_58 = arith.constant 3 : i32
      %c0_i32_59 = arith.constant 0 : i32
      %99 = tpu.memref_slice %arg8[%c0_i32_55, %c3_i32_58, %c0_i32_59] : memref<2x8x128xf32, #tpu.memory_space<vmem>> -> memref<1x1x128xf32, #tpu.memory_space<vmem>>
      %100 = tpu.memref_squeeze %99 : memref<1x1x128xf32, #tpu.memory_space<vmem>> -> memref<1x128xf32, #tpu.memory_space<vmem>>
      %101 = tpu.memref_slice %arg9[%c0_i32_56] : memref<2x!tpu.dma_semaphore, #tpu.memory_space<semaphore_mem>> -> memref<1x!tpu.dma_semaphore, #tpu.memory_space<semaphore_mem>>
      %102 = tpu.memref_squeeze %101 : memref<1x!tpu.dma_semaphore, #tpu.memory_space<semaphore_mem>> -> memref<!tpu.dma_semaphore, #tpu.memory_space<semaphore_mem>>
      tpu.enqueue_dma source(%98 : memref<1x128xf32, #tpu.memory_space<any>>) target(%100 : memref<1x128xf32, #tpu.memory_space<vmem>>) target_semaphore(%102 : memref<!tpu.dma_semaphore, #tpu.memory_space<semaphore_mem>>)
      %c4_i32 = arith.constant 4 : i32
      %103 = arith.addi %54, %c4_i32 : i32
      %c29_i32_60 = arith.constant 29 : i32
      %104 = arith.minsi %103, %c29_i32_60 : i32
      %105 = arith.index_cast %104 : i32 to index
      %106 = memref.load %arg2[%105] : memref<30xi32, #tpu.memory_space<smem>>
      %c0_i32_61 = arith.constant 0 : i32
      %c9_i32_62 = arith.constant 9 : i32
      %107 = arith.maxsi %c0_i32_61, %106 : i32
      %108 = arith.minsi %c9_i32_62, %107 : i32
      %c0_i32_63 = arith.constant 0 : i32
      %c0_i32_64 = arith.constant 0 : i32
      %c0_i32_65 = arith.constant 0 : i32
      %109 = tpu.memref_slice %arg3[%104, %108, %c0_i32_65] : memref<30x10x128xf32, #tpu.memory_space<any>> -> memref<1x1x128xf32, #tpu.memory_space<any>>
      %110 = tpu.memref_squeeze %109 : memref<1x1x128xf32, #tpu.memory_space<any>> -> memref<1x128xf32, #tpu.memory_space<any>>
      %c4_i32_66 = arith.constant 4 : i32
      %c0_i32_67 = arith.constant 0 : i32
      %111 = tpu.memref_slice %arg8[%c0_i32_63, %c4_i32_66, %c0_i32_67] : memref<2x8x128xf32, #tpu.memory_space<vmem>> -> memref<1x1x128xf32, #tpu.memory_space<vmem>>
      %112 = tpu.memref_squeeze %111 : memref<1x1x128xf32, #tpu.memory_space<vmem>> -> memref<1x128xf32, #tpu.memory_space<vmem>>
      %113 = tpu.memref_slice %arg9[%c0_i32_64] : memref<2x!tpu.dma_semaphore, #tpu.memory_space<semaphore_mem>> -> memref<1x!tpu.dma_semaphore, #tpu.memory_space<semaphore_mem>>
      %114 = tpu.memref_squeeze %113 : memref<1x!tpu.dma_semaphore, #tpu.memory_space<semaphore_mem>> -> memref<!tpu.dma_semaphore, #tpu.memory_space<semaphore_mem>>
      tpu.enqueue_dma source(%110 : memref<1x128xf32, #tpu.memory_space<any>>) target(%112 : memref<1x128xf32, #tpu.memory_space<vmem>>) target_semaphore(%114 : memref<!tpu.dma_semaphore, #tpu.memory_space<semaphore_mem>>)
      %c5_i32 = arith.constant 5 : i32
      %115 = arith.addi %54, %c5_i32 : i32
      %c29_i32_68 = arith.constant 29 : i32
      %116 = arith.minsi %115, %c29_i32_68 : i32
      %117 = arith.index_cast %116 : i32 to index
      %118 = memref.load %arg2[%117] : memref<30xi32, #tpu.memory_space<smem>>
      %c0_i32_69 = arith.constant 0 : i32
      %c9_i32_70 = arith.constant 9 : i32
      %119 = arith.maxsi %c0_i32_69, %118 : i32
      %120 = arith.minsi %c9_i32_70, %119 : i32
      %c0_i32_71 = arith.constant 0 : i32
      %c0_i32_72 = arith.constant 0 : i32
      %c0_i32_73 = arith.constant 0 : i32
      %121 = tpu.memref_slice %arg3[%116, %120, %c0_i32_73] : memref<30x10x128xf32, #tpu.memory_space<any>> -> memref<1x1x128xf32, #tpu.memory_space<any>>
      %122 = tpu.memref_squeeze %121 : memref<1x1x128xf32, #tpu.memory_space<any>> -> memref<1x128xf32, #tpu.memory_space<any>>
      %c5_i32_74 = arith.constant 5 : i32
      %c0_i32_75 = arith.constant 0 : i32
      %123 = tpu.memref_slice %arg8[%c0_i32_71, %c5_i32_74, %c0_i32_75] : memref<2x8x128xf32, #tpu.memory_space<vmem>> -> memref<1x1x128xf32, #tpu.memory_space<vmem>>
      %124 = tpu.memref_squeeze %123 : memref<1x1x128xf32, #tpu.memory_space<vmem>> -> memref<1x128xf32, #tpu.memory_space<vmem>>
      %125 = tpu.memref_slice %arg9[%c0_i32_72] : memref<2x!tpu.dma_semaphore, #tpu.memory_space<semaphore_mem>> -> memref<1x!tpu.dma_semaphore, #tpu.memory_space<semaphore_mem>>
      %126 = tpu.memref_squeeze %125 : memref<1x!tpu.dma_semaphore, #tpu.memory_space<semaphore_mem>> -> memref<!tpu.dma_semaphore, #tpu.memory_space<semaphore_mem>>
      tpu.enqueue_dma source(%122 : memref<1x128xf32, #tpu.memory_space<any>>) target(%124 : memref<1x128xf32, #tpu.memory_space<vmem>>) target_semaphore(%126 : memref<!tpu.dma_semaphore, #tpu.memory_space<semaphore_mem>>)
      %c6_i32 = arith.constant 6 : i32
      %127 = arith.addi %54, %c6_i32 : i32
      %c29_i32_76 = arith.constant 29 : i32
      %128 = arith.minsi %127, %c29_i32_76 : i32
      %129 = arith.index_cast %128 : i32 to index
      %130 = memref.load %arg2[%129] : memref<30xi32, #tpu.memory_space<smem>>
      %c0_i32_77 = arith.constant 0 : i32
      %c9_i32_78 = arith.constant 9 : i32
      %131 = arith.maxsi %c0_i32_77, %130 : i32
      %132 = arith.minsi %c9_i32_78, %131 : i32
      %c0_i32_79 = arith.constant 0 : i32
      %c0_i32_80 = arith.constant 0 : i32
      %c0_i32_81 = arith.constant 0 : i32
      %133 = tpu.memref_slice %arg3[%128, %132, %c0_i32_81] : memref<30x10x128xf32, #tpu.memory_space<any>> -> memref<1x1x128xf32, #tpu.memory_space<any>>
      %134 = tpu.memref_squeeze %133 : memref<1x1x128xf32, #tpu.memory_space<any>> -> memref<1x128xf32, #tpu.memory_space<any>>
      %c6_i32_82 = arith.constant 6 : i32
      %c0_i32_83 = arith.constant 0 : i32
      %135 = tpu.memref_slice %arg8[%c0_i32_79, %c6_i32_82, %c0_i32_83] : memref<2x8x128xf32, #tpu.memory_space<vmem>> -> memref<1x1x128xf32, #tpu.memory_space<vmem>>
      %136 = tpu.memref_squeeze %135 : memref<1x1x128xf32, #tpu.memory_space<vmem>> -> memref<1x128xf32, #tpu.memory_space<vmem>>
      %137 = tpu.memref_slice %arg9[%c0_i32_80] : memref<2x!tpu.dma_semaphore, #tpu.memory_space<semaphore_mem>> -> memref<1x!tpu.dma_semaphore, #tpu.memory_space<semaphore_mem>>
      %138 = tpu.memref_squeeze %137 : memref<1x!tpu.dma_semaphore, #tpu.memory_space<semaphore_mem>> -> memref<!tpu.dma_semaphore, #tpu.memory_space<semaphore_mem>>
      tpu.enqueue_dma source(%134 : memref<1x128xf32, #tpu.memory_space<any>>) target(%136 : memref<1x128xf32, #tpu.memory_space<vmem>>) target_semaphore(%138 : memref<!tpu.dma_semaphore, #tpu.memory_space<semaphore_mem>>)
      %c7_i32 = arith.constant 7 : i32
      %139 = arith.addi %54, %c7_i32 : i32
      %c29_i32_84 = arith.constant 29 : i32
      %140 = arith.minsi %139, %c29_i32_84 : i32
      %141 = arith.index_cast %140 : i32 to index
      %142 = memref.load %arg2[%141] : memref<30xi32, #tpu.memory_space<smem>>
      %c0_i32_85 = arith.constant 0 : i32
      %c9_i32_86 = arith.constant 9 : i32
      %143 = arith.maxsi %c0_i32_85, %142 : i32
      %144 = arith.minsi %c9_i32_86, %143 : i32
      %c0_i32_87 = arith.constant 0 : i32
      %c0_i32_88 = arith.constant 0 : i32
      %c0_i32_89 = arith.constant 0 : i32
      %145 = tpu.memref_slice %arg3[%140, %144, %c0_i32_89] : memref<30x10x128xf32, #tpu.memory_space<any>> -> memref<1x1x128xf32, #tpu.memory_space<any>>
      %146 = tpu.memref_squeeze %145 : memref<1x1x128xf32, #tpu.memory_space<any>> -> memref<1x128xf32, #tpu.memory_space<any>>
      %c7_i32_90 = arith.constant 7 : i32
      %c0_i32_91 = arith.constant 0 : i32
      %147 = tpu.memref_slice %arg8[%c0_i32_87, %c7_i32_90, %c0_i32_91] : memref<2x8x128xf32, #tpu.memory_space<vmem>> -> memref<1x1x128xf32, #tpu.memory_space<vmem>>
      %148 = tpu.memref_squeeze %147 : memref<1x1x128xf32, #tpu.memory_space<vmem>> -> memref<1x128xf32, #tpu.memory_space<vmem>>
      %149 = tpu.memref_slice %arg9[%c0_i32_88] : memref<2x!tpu.dma_semaphore, #tpu.memory_space<semaphore_mem>> -> memref<1x!tpu.dma_semaphore, #tpu.memory_space<semaphore_mem>>
      %150 = tpu.memref_squeeze %149 : memref<1x!tpu.dma_semaphore, #tpu.memory_space<semaphore_mem>> -> memref<!tpu.dma_semaphore, #tpu.memory_space<semaphore_mem>>
      tpu.enqueue_dma source(%146 : memref<1x128xf32, #tpu.memory_space<any>>) target(%148 : memref<1x128xf32, #tpu.memory_space<vmem>>) target_semaphore(%150 : memref<!tpu.dma_semaphore, #tpu.memory_space<semaphore_mem>>)
    } else {
    }
    %c1_i32_5 = arith.constant 1 : i32
    %13 = arith.addi %arg1, %c1_i32_5 : i32
    %c2_i32_6 = arith.constant 2 : i32
    %14 = arith.cmpi slt, %13, %c2_i32_6 : i32
    %15 = arith.extui %14 : i1 to i32
    %c0_i32_7 = arith.constant 0 : i32
    %16 = arith.cmpi ne, %15, %c0_i32_7 : i32
    scf.if %16 {
      %c2_i32_26 = arith.constant 2 : i32
      %53 = arith.muli %arg0, %c2_i32_26 : i32
      %54 = arith.addi %53, %arg1 : i32
      %c1_i32_27 = arith.constant 1 : i32
      %55 = arith.addi %54, %c1_i32_27 : i32
      %c1_i32_28 = arith.constant 1 : i32
      %56 = arith.subi %c1_i32_28, %9 : i32
      %c8_i32 = arith.constant 8 : i32
      %57 = arith.muli %55, %c8_i32 : i32
      %c0_i32_29 = arith.constant 0 : i32
      %58 = arith.addi %57, %c0_i32_29 : i32
      %c29_i32 = arith.constant 29 : i32
      %59 = arith.minsi %58, %c29_i32 : i32
      %60 = arith.index_cast %59 : i32 to index
      %61 = memref.load %arg2[%60] : memref<30xi32, #tpu.memory_space<smem>>
      %c0_i32_30 = arith.constant 0 : i32
      %c9_i32 = arith.constant 9 : i32
      %62 = arith.maxsi %c0_i32_30, %61 : i32
      %63 = arith.minsi %c9_i32, %62 : i32
      %c0_i32_31 = arith.constant 0 : i32
      %64 = tpu.memref_slice %arg3[%59, %63, %c0_i32_31] : memref<30x10x128xf32, #tpu.memory_space<any>> -> memref<1x1x128xf32, #tpu.memory_space<any>>
      %65 = tpu.memref_squeeze %64 : memref<1x1x128xf32, #tpu.memory_space<any>> -> memref<1x128xf32, #tpu.memory_space<any>>
      %c0_i32_32 = arith.constant 0 : i32
      %c0_i32_33 = arith.constant 0 : i32
      %66 = tpu.memref_slice %arg8[%56, %c0_i32_32, %c0_i32_33] : memref<2x8x128xf32, #tpu.memory_space<vmem>> -> memref<1x1x128xf32, #tpu.memory_space<vmem>>
      %67 = tpu.memref_squeeze %66 : memref<1x1x128xf32, #tpu.memory_space<vmem>> -> memref<1x128xf32, #tpu.memory_space<vmem>>
      %68 = tpu.memref_slice %arg9[%56] : memref<2x!tpu.dma_semaphore, #tpu.memory_space<semaphore_mem>> -> memref<1x!tpu.dma_semaphore, #tpu.memory_space<semaphore_mem>>
      %69 = tpu.memref_squeeze %68 : memref<1x!tpu.dma_semaphore, #tpu.memory_space<semaphore_mem>> -> memref<!tpu.dma_semaphore, #tpu.memory_space<semaphore_mem>>
      tpu.enqueue_dma source(%65 : memref<1x128xf32, #tpu.memory_space<any>>) target(%67 : memref<1x128xf32, #tpu.memory_space<vmem>>) target_semaphore(%69 : memref<!tpu.dma_semaphore, #tpu.memory_space<semaphore_mem>>)
      %c1_i32_34 = arith.constant 1 : i32
      %70 = arith.addi %57, %c1_i32_34 : i32
      %c29_i32_35 = arith.constant 29 : i32
      %71 = arith.minsi %70, %c29_i32_35 : i32
      %72 = arith.index_cast %71 : i32 to index
      %73 = memref.load %arg2[%72] : memref<30xi32, #tpu.memory_space<smem>>
      %c0_i32_36 = arith.constant 0 : i32
      %c9_i32_37 = arith.constant 9 : i32
      %74 = arith.maxsi %c0_i32_36, %73 : i32
      %75 = arith.minsi %c9_i32_37, %74 : i32
      %c0_i32_38 = arith.constant 0 : i32
      %76 = tpu.memref_slice %arg3[%71, %75, %c0_i32_38] : memref<30x10x128xf32, #tpu.memory_space<any>> -> memref<1x1x128xf32, #tpu.memory_space<any>>
      %77 = tpu.memref_squeeze %76 : memref<1x1x128xf32, #tpu.memory_space<any>> -> memref<1x128xf32, #tpu.memory_space<any>>
      %c1_i32_39 = arith.constant 1 : i32
      %c0_i32_40 = arith.constant 0 : i32
      %78 = tpu.memref_slice %arg8[%56, %c1_i32_39, %c0_i32_40] : memref<2x8x128xf32, #tpu.memory_space<vmem>> -> memref<1x1x128xf32, #tpu.memory_space<vmem>>
      %79 = tpu.memref_squeeze %78 : memref<1x1x128xf32, #tpu.memory_space<vmem>> -> memref<1x128xf32, #tpu.memory_space<vmem>>
      %80 = tpu.memref_slice %arg9[%56] : memref<2x!tpu.dma_semaphore, #tpu.memory_space<semaphore_mem>> -> memref<1x!tpu.dma_semaphore, #tpu.memory_space<semaphore_mem>>
      %81 = tpu.memref_squeeze %80 : memref<1x!tpu.dma_semaphore, #tpu.memory_space<semaphore_mem>> -> memref<!tpu.dma_semaphore, #tpu.memory_space<semaphore_mem>>
      tpu.enqueue_dma source(%77 : memref<1x128xf32, #tpu.memory_space<any>>) target(%79 : memref<1x128xf32, #tpu.memory_space<vmem>>) target_semaphore(%81 : memref<!tpu.dma_semaphore, #tpu.memory_space<semaphore_mem>>)
      %c2_i32_41 = arith.constant 2 : i32
      %82 = arith.addi %57, %c2_i32_41 : i32
      %c29_i32_42 = arith.constant 29 : i32
      %83 = arith.minsi %82, %c29_i32_42 : i32
      %84 = arith.index_cast %83 : i32 to index
      %85 = memref.load %arg2[%84] : memref<30xi32, #tpu.memory_space<smem>>
      %c0_i32_43 = arith.constant 0 : i32
      %c9_i32_44 = arith.constant 9 : i32
      %86 = arith.maxsi %c0_i32_43, %85 : i32
      %87 = arith.minsi %c9_i32_44, %86 : i32
      %c0_i32_45 = arith.constant 0 : i32
      %88 = tpu.memref_slice %arg3[%83, %87, %c0_i32_45] : memref<30x10x128xf32, #tpu.memory_space<any>> -> memref<1x1x128xf32, #tpu.memory_space<any>>
      %89 = tpu.memref_squeeze %88 : memref<1x1x128xf32, #tpu.memory_space<any>> -> memref<1x128xf32, #tpu.memory_space<any>>
      %c2_i32_46 = arith.constant 2 : i32
      %c0_i32_47 = arith.constant 0 : i32
      %90 = tpu.memref_slice %arg8[%56, %c2_i32_46, %c0_i32_47] : memref<2x8x128xf32, #tpu.memory_space<vmem>> -> memref<1x1x128xf32, #tpu.memory_space<vmem>>
      %91 = tpu.memref_squeeze %90 : memref<1x1x128xf32, #tpu.memory_space<vmem>> -> memref<1x128xf32, #tpu.memory_space<vmem>>
      %92 = tpu.memref_slice %arg9[%56] : memref<2x!tpu.dma_semaphore, #tpu.memory_space<semaphore_mem>> -> memref<1x!tpu.dma_semaphore, #tpu.memory_space<semaphore_mem>>
      %93 = tpu.memref_squeeze %92 : memref<1x!tpu.dma_semaphore, #tpu.memory_space<semaphore_mem>> -> memref<!tpu.dma_semaphore, #tpu.memory_space<semaphore_mem>>
      tpu.enqueue_dma source(%89 : memref<1x128xf32, #tpu.memory_space<any>>) target(%91 : memref<1x128xf32, #tpu.memory_space<vmem>>) target_semaphore(%93 : memref<!tpu.dma_semaphore, #tpu.memory_space<semaphore_mem>>)
      %c3_i32 = arith.constant 3 : i32
      %94 = arith.addi %57, %c3_i32 : i32
      %c29_i32_48 = arith.constant 29 : i32
      %95 = arith.minsi %94, %c29_i32_48 : i32
      %96 = arith.index_cast %95 : i32 to index
      %97 = memref.load %arg2[%96] : memref<30xi32, #tpu.memory_space<smem>>
      %c0_i32_49 = arith.constant 0 : i32
      %c9_i32_50 = arith.constant 9 : i32
      %98 = arith.maxsi %c0_i32_49, %97 : i32
      %99 = arith.minsi %c9_i32_50, %98 : i32
      %c0_i32_51 = arith.constant 0 : i32
      %100 = tpu.memref_slice %arg3[%95, %99, %c0_i32_51] : memref<30x10x128xf32, #tpu.memory_space<any>> -> memref<1x1x128xf32, #tpu.memory_space<any>>
      %101 = tpu.memref_squeeze %100 : memref<1x1x128xf32, #tpu.memory_space<any>> -> memref<1x128xf32, #tpu.memory_space<any>>
      %c3_i32_52 = arith.constant 3 : i32
      %c0_i32_53 = arith.constant 0 : i32
      %102 = tpu.memref_slice %arg8[%56, %c3_i32_52, %c0_i32_53] : memref<2x8x128xf32, #tpu.memory_space<vmem>> -> memref<1x1x128xf32, #tpu.memory_space<vmem>>
      %103 = tpu.memref_squeeze %102 : memref<1x1x128xf32, #tpu.memory_space<vmem>> -> memref<1x128xf32, #tpu.memory_space<vmem>>
      %104 = tpu.memref_slice %arg9[%56] : memref<2x!tpu.dma_semaphore, #tpu.memory_space<semaphore_mem>> -> memref<1x!tpu.dma_semaphore, #tpu.memory_space<semaphore_mem>>
      %105 = tpu.memref_squeeze %104 : memref<1x!tpu.dma_semaphore, #tpu.memory_space<semaphore_mem>> -> memref<!tpu.dma_semaphore, #tpu.memory_space<semaphore_mem>>
      tpu.enqueue_dma source(%101 : memref<1x128xf32, #tpu.memory_space<any>>) target(%103 : memref<1x128xf32, #tpu.memory_space<vmem>>) target_semaphore(%105 : memref<!tpu.dma_semaphore, #tpu.memory_space<semaphore_mem>>)
      %c4_i32 = arith.constant 4 : i32
      %106 = arith.addi %57, %c4_i32 : i32
      %c29_i32_54 = arith.constant 29 : i32
      %107 = arith.minsi %106, %c29_i32_54 : i32
      %108 = arith.index_cast %107 : i32 to index
      %109 = memref.load %arg2[%108] : memref<30xi32, #tpu.memory_space<smem>>
      %c0_i32_55 = arith.constant 0 : i32
      %c9_i32_56 = arith.constant 9 : i32
      %110 = arith.maxsi %c0_i32_55, %109 : i32
      %111 = arith.minsi %c9_i32_56, %110 : i32
      %c0_i32_57 = arith.constant 0 : i32
      %112 = tpu.memref_slice %arg3[%107, %111, %c0_i32_57] : memref<30x10x128xf32, #tpu.memory_space<any>> -> memref<1x1x128xf32, #tpu.memory_space<any>>
      %113 = tpu.memref_squeeze %112 : memref<1x1x128xf32, #tpu.memory_space<any>> -> memref<1x128xf32, #tpu.memory_space<any>>
      %c4_i32_58 = arith.constant 4 : i32
      %c0_i32_59 = arith.constant 0 : i32
      %114 = tpu.memref_slice %arg8[%56, %c4_i32_58, %c0_i32_59] : memref<2x8x128xf32, #tpu.memory_space<vmem>> -> memref<1x1x128xf32, #tpu.memory_space<vmem>>
      %115 = tpu.memref_squeeze %114 : memref<1x1x128xf32, #tpu.memory_space<vmem>> -> memref<1x128xf32, #tpu.memory_space<vmem>>
      %116 = tpu.memref_slice %arg9[%56] : memref<2x!tpu.dma_semaphore, #tpu.memory_space<semaphore_mem>> -> memref<1x!tpu.dma_semaphore, #tpu.memory_space<semaphore_mem>>
      %117 = tpu.memref_squeeze %116 : memref<1x!tpu.dma_semaphore, #tpu.memory_space<semaphore_mem>> -> memref<!tpu.dma_semaphore, #tpu.memory_space<semaphore_mem>>
      tpu.enqueue_dma source(%113 : memref<1x128xf32, #tpu.memory_space<any>>) target(%115 : memref<1x128xf32, #tpu.memory_space<vmem>>) target_semaphore(%117 : memref<!tpu.dma_semaphore, #tpu.memory_space<semaphore_mem>>)
      %c5_i32 = arith.constant 5 : i32
      %118 = arith.addi %57, %c5_i32 : i32
      %c29_i32_60 = arith.constant 29 : i32
      %119 = arith.minsi %118, %c29_i32_60 : i32
      %120 = arith.index_cast %119 : i32 to index
      %121 = memref.load %arg2[%120] : memref<30xi32, #tpu.memory_space<smem>>
      %c0_i32_61 = arith.constant 0 : i32
      %c9_i32_62 = arith.constant 9 : i32
      %122 = arith.maxsi %c0_i32_61, %121 : i32
      %123 = arith.minsi %c9_i32_62, %122 : i32
      %c0_i32_63 = arith.constant 0 : i32
      %124 = tpu.memref_slice %arg3[%119, %123, %c0_i32_63] : memref<30x10x128xf32, #tpu.memory_space<any>> -> memref<1x1x128xf32, #tpu.memory_space<any>>
      %125 = tpu.memref_squeeze %124 : memref<1x1x128xf32, #tpu.memory_space<any>> -> memref<1x128xf32, #tpu.memory_space<any>>
      %c5_i32_64 = arith.constant 5 : i32
      %c0_i32_65 = arith.constant 0 : i32
      %126 = tpu.memref_slice %arg8[%56, %c5_i32_64, %c0_i32_65] : memref<2x8x128xf32, #tpu.memory_space<vmem>> -> memref<1x1x128xf32, #tpu.memory_space<vmem>>
      %127 = tpu.memref_squeeze %126 : memref<1x1x128xf32, #tpu.memory_space<vmem>> -> memref<1x128xf32, #tpu.memory_space<vmem>>
      %128 = tpu.memref_slice %arg9[%56] : memref<2x!tpu.dma_semaphore, #tpu.memory_space<semaphore_mem>> -> memref<1x!tpu.dma_semaphore, #tpu.memory_space<semaphore_mem>>
      %129 = tpu.memref_squeeze %128 : memref<1x!tpu.dma_semaphore, #tpu.memory_space<semaphore_mem>> -> memref<!tpu.dma_semaphore, #tpu.memory_space<semaphore_mem>>
      tpu.enqueue_dma source(%125 : memref<1x128xf32, #tpu.memory_space<any>>) target(%127 : memref<1x128xf32, #tpu.memory_space<vmem>>) target_semaphore(%129 : memref<!tpu.dma_semaphore, #tpu.memory_space<semaphore_mem>>)
      %c6_i32 = arith.constant 6 : i32
      %130 = arith.addi %57, %c6_i32 : i32
      %c29_i32_66 = arith.constant 29 : i32
      %131 = arith.minsi %130, %c29_i32_66 : i32
      %132 = arith.index_cast %131 : i32 to index
      %133 = memref.load %arg2[%132] : memref<30xi32, #tpu.memory_space<smem>>
      %c0_i32_67 = arith.constant 0 : i32
      %c9_i32_68 = arith.constant 9 : i32
      %134 = arith.maxsi %c0_i32_67, %133 : i32
      %135 = arith.minsi %c9_i32_68, %134 : i32
      %c0_i32_69 = arith.constant 0 : i32
      %136 = tpu.memref_slice %arg3[%131, %135, %c0_i32_69] : memref<30x10x128xf32, #tpu.memory_space<any>> -> memref<1x1x128xf32, #tpu.memory_space<any>>
      %137 = tpu.memref_squeeze %136 : memref<1x1x128xf32, #tpu.memory_space<any>> -> memref<1x128xf32, #tpu.memory_space<any>>
      %c6_i32_70 = arith.constant 6 : i32
      %c0_i32_71 = arith.constant 0 : i32
      %138 = tpu.memref_slice %arg8[%56, %c6_i32_70, %c0_i32_71] : memref<2x8x128xf32, #tpu.memory_space<vmem>> -> memref<1x1x128xf32, #tpu.memory_space<vmem>>
      %139 = tpu.memref_squeeze %138 : memref<1x1x128xf32, #tpu.memory_space<vmem>> -> memref<1x128xf32, #tpu.memory_space<vmem>>
      %140 = tpu.memref_slice %arg9[%56] : memref<2x!tpu.dma_semaphore, #tpu.memory_space<semaphore_mem>> -> memref<1x!tpu.dma_semaphore, #tpu.memory_space<semaphore_mem>>
      %141 = tpu.memref_squeeze %140 : memref<1x!tpu.dma_semaphore, #tpu.memory_space<semaphore_mem>> -> memref<!tpu.dma_semaphore, #tpu.memory_space<semaphore_mem>>
      tpu.enqueue_dma source(%137 : memref<1x128xf32, #tpu.memory_space<any>>) target(%139 : memref<1x128xf32, #tpu.memory_space<vmem>>) target_semaphore(%141 : memref<!tpu.dma_semaphore, #tpu.memory_space<semaphore_mem>>)
      %c7_i32 = arith.constant 7 : i32
      %142 = arith.addi %57, %c7_i32 : i32
      %c29_i32_72 = arith.constant 29 : i32
      %143 = arith.minsi %142, %c29_i32_72 : i32
      %144 = arith.index_cast %143 : i32 to index
      %145 = memref.load %arg2[%144] : memref<30xi32, #tpu.memory_space<smem>>
      %c0_i32_73 = arith.constant 0 : i32
      %c9_i32_74 = arith.constant 9 : i32
      %146 = arith.maxsi %c0_i32_73, %145 : i32
      %147 = arith.minsi %c9_i32_74, %146 : i32
      %c0_i32_75 = arith.constant 0 : i32
      %148 = tpu.memref_slice %arg3[%143, %147, %c0_i32_75] : memref<30x10x128xf32, #tpu.memory_space<any>> -> memref<1x1x128xf32, #tpu.memory_space<any>>
      %149 = tpu.memref_squeeze %148 : memref<1x1x128xf32, #tpu.memory_space<any>> -> memref<1x128xf32, #tpu.memory_space<any>>
      %c7_i32_76 = arith.constant 7 : i32
      %c0_i32_77 = arith.constant 0 : i32
      %150 = tpu.memref_slice %arg8[%56, %c7_i32_76, %c0_i32_77] : memref<2x8x128xf32, #tpu.memory_space<vmem>> -> memref<1x1x128xf32, #tpu.memory_space<vmem>>
      %151 = tpu.memref_squeeze %150 : memref<1x1x128xf32, #tpu.memory_space<vmem>> -> memref<1x128xf32, #tpu.memory_space<vmem>>
      %152 = tpu.memref_slice %arg9[%56] : memref<2x!tpu.dma_semaphore, #tpu.memory_space<semaphore_mem>> -> memref<1x!tpu.dma_semaphore, #tpu.memory_space<semaphore_mem>>
      %153 = tpu.memref_squeeze %152 : memref<1x!tpu.dma_semaphore, #tpu.memory_space<semaphore_mem>> -> memref<!tpu.dma_semaphore, #tpu.memory_space<semaphore_mem>>
      tpu.enqueue_dma source(%149 : memref<1x128xf32, #tpu.memory_space<any>>) target(%151 : memref<1x128xf32, #tpu.memory_space<vmem>>) target_semaphore(%153 : memref<!tpu.dma_semaphore, #tpu.memory_space<semaphore_mem>>)
    } else {
    }
    %c0_i32_8 = arith.constant 0 : i32
    %c0_i32_9 = arith.constant 0 : i32
    %17 = tpu.memref_slice %arg8[%9, %c0_i32_8, %c0_i32_9] : memref<2x8x128xf32, #tpu.memory_space<vmem>> -> memref<1x8x128xf32, #tpu.memory_space<vmem>>
    %18 = tpu.memref_squeeze %17 : memref<1x8x128xf32, #tpu.memory_space<vmem>> -> memref<8x128xf32, #tpu.memory_space<vmem>>
    %c0_i32_10 = arith.constant 0 : i32
    %c0_i32_11 = arith.constant 0 : i32
    %19 = tpu.memref_slice %arg8[%9, %c0_i32_10, %c0_i32_11] : memref<2x8x128xf32, #tpu.memory_space<vmem>> -> memref<1x8x128xf32, #tpu.memory_space<vmem>>
    %20 = tpu.memref_squeeze %19 : memref<1x8x128xf32, #tpu.memory_space<vmem>> -> memref<8x128xf32, #tpu.memory_space<vmem>>
    %21 = tpu.memref_slice %arg9[%9] : memref<2x!tpu.dma_semaphore, #tpu.memory_space<semaphore_mem>> -> memref<1x!tpu.dma_semaphore, #tpu.memory_space<semaphore_mem>>
    %22 = tpu.memref_squeeze %21 : memref<1x!tpu.dma_semaphore, #tpu.memory_space<semaphore_mem>> -> memref<!tpu.dma_semaphore, #tpu.memory_space<semaphore_mem>>
    tpu.wait_dma2 semaphore(%22 : memref<!tpu.dma_semaphore, #tpu.memory_space<semaphore_mem>>) src(%18 : memref<8x128xf32, #tpu.memory_space<vmem>>) dst(%20 : memref<8x128xf32, #tpu.memory_space<vmem>>)
    %23 = arith.index_cast %9 : i32 to index
    %c0 = arith.constant 0 : index
    %c0_12 = arith.constant 0 : index
    %24 = vector.load %arg8[%23, %c0, %c0_12] : memref<2x8x128xf32, #tpu.memory_space<vmem>>, vector<1x8x128xf32>
    %25 = vector.shape_cast %24 : vector<1x8x128xf32> to vector<8x128xf32>
    %cst = arith.constant dense<0.000000e+00> : vector<8xf32>
    %26 = vector.multi_reduction <add>, %25, %cst [1] : vector<8x128xf32> to vector<8xf32>
    %27 = vector.shape_cast %26 : vector<8xf32> to vector<8x1xf32>
    %cst_13 = arith.constant 1.280000e+02 : f32
    %28 = vector.broadcast %cst_13 : f32 to vector<8x1xf32>
    %29 = arith.divf %27, %28 : vector<8x1xf32>
    %30 = arith.mulf %25, %25 : vector<8x128xf32>
    %cst_14 = arith.constant dense<0.000000e+00> : vector<8xf32>
    %31 = vector.multi_reduction <add>, %30, %cst_14 [1] : vector<8x128xf32> to vector<8xf32>
    %32 = vector.shape_cast %31 : vector<8xf32> to vector<8x1xf32>
    %cst_15 = arith.constant 1.280000e+02 : f32
    %33 = vector.broadcast %cst_15 : f32 to vector<8x1xf32>
    %34 = arith.divf %32, %33 : vector<8x1xf32>
    %35 = arith.mulf %29, %29 : vector<8x1xf32>
    %36 = arith.subf %34, %35 : vector<8x1xf32>
    %cst_16 = arith.constant 9.99999974E-6 : f32
    %37 = vector.broadcast %cst_16 : f32 to vector<8x1xf32>
    %38 = arith.addf %36, %37 : vector<8x1xf32>
    %39 = math.rsqrt %38 : vector<8x1xf32>
    %40 = vector.broadcast %29 : vector<8x1xf32> to vector<8x128xf32>
    %41 = arith.subf %25, %40 : vector<8x128xf32>
    %42 = vector.broadcast %39 : vector<8x1xf32> to vector<8x128xf32>
    %43 = arith.mulf %41, %42 : vector<8x128xf32>
    %c0_17 = arith.constant 0 : index
    %c0_18 = arith.constant 0 : index
    %44 = vector.load %arg4[%c0_17, %c0_18] : memref<1x128xf32, #tpu.memory_space<vmem>>, vector<1x128xf32>
    %45 = vector.broadcast %44 : vector<1x128xf32> to vector<8x128xf32>
    %46 = arith.mulf %43, %45 : vector<8x128xf32>
    %c0_19 = arith.constant 0 : index
    %c0_20 = arith.constant 0 : index
    %47 = vector.load %arg5[%c0_19, %c0_20] : memref<1x128xf32, #tpu.memory_space<vmem>>, vector<1x128xf32>
    %48 = vector.broadcast %47 : vector<1x128xf32> to vector<8x128xf32>
    %49 = arith.addf %46, %48 : vector<8x128xf32>
    %c0_21 = arith.constant 0 : index
    %c0_22 = arith.constant 0 : index
    %50 = vector.load %arg6[%c0_21, %c0_22] : memref<128x128xf32, #tpu.memory_space<vmem>>, vector<128x128xf32>
    %cst_23 = arith.constant dense<0.000000e+00> : vector<8x128xf32>
    %51 = tpu.matmul %49, %50, %cst_23 {dimension_numbers = #tpu.dot_dimension_numbers<[1], [0], [0], [1], [0, 0, 1, 1], [], []>} : vector<8x128xf32>, vector<128x128xf32>, vector<8x128xf32> -> vector<8x128xf32>
    %c0_24 = arith.constant 0 : index
    %c0_25 = arith.constant 0 : index
    %52 = vector.load %arg7[%c0_24, %c0_25] : memref<8x128xf32, #tpu.memory_space<vmem>>, vector<8x128xf32>
    tpu.vector_store %arg7[%c0_24, %c0_25], %51 {strides = array<i32>} : memref<8x128xf32, #tpu.memory_space<vmem>>, vector<8x128xf32>,
    return
  }
  func.func @transform_1(%arg0: i32, %arg1: i32, %arg2: memref<30xi32, #tpu.memory_space<smem>>) -> (i32, i32) {
    %c0_i32 = arith.constant 0 : i32
    %c0_i32_0 = arith.constant 0 : i32
    %c0_i32_1 = arith.constant 0 : i32
    return %c0_i32, %c0_i32_0 : i32, i32
  }
  func.func @transform_2(%arg0: i32, %arg1: i32, %arg2: memref<30xi32, #tpu.memory_space<smem>>) -> (i32, i32) {
    %c0_i32 = arith.constant 0 : i32
    %c0_i32_0 = arith.constant 0 : i32
    %c0_i32_1 = arith.constant 0 : i32
    return %c0_i32, %c0_i32_0 : i32, i32
  }
  func.func @transform_3(%arg0: i32, %arg1: i32, %arg2: memref<30xi32, #tpu.memory_space<smem>>) -> (i32, i32) {
    %c0_i32 = arith.constant 0 : i32
    %c0_i32_0 = arith.constant 0 : i32
    %c0_i32_1 = arith.constant 0 : i32
    return %c0_i32, %c0_i32_0 : i32, i32
  }
  func.func @transform_4(%arg0: i32, %arg1: i32, %arg2: memref<30xi32, #tpu.memory_space<smem>>) -> (i32, i32) {
    %c2_i32 = arith.constant 2 : i32
    %0 = arith.muli %arg0, %c2_i32 : i32
    %1 = arith.addi %0, %arg1 : i32
    %c0_i32 = arith.constant 0 : i32
    %c0_i32_0 = arith.constant 0 : i32
    return %1, %c0_i32 : i32, i32
  }
}

</mosaic_0001>

<llo_original>
// kernel: tpu_custom_call.1
$region0: #{tpu_custom_call.1}
  #allocation0 [shape = 'u32[]', space=smem, size = 0x4, offset = 0x4, fixed_abs, tag = 'smem constant byte address 0x4 - core index']
  #allocation1 [shape = 'u32[72,128]{1,0:T(1,128)}', space=vmem, size = 0x9000, scoped, tag = 'internal scratch']
  #allocation2 [shape = 'f32[2,8,128]{2,1,0:T(8,128)}', space=vmem, size = 0x2000, scoped, tag = 'scratch operand']
  #allocation3 [shape = 's32[2]{0}', space=sflag, size = 0x8, scoped, tag = 'scratch operand']
  #allocation4 [shape = 's32[1]{0}', space=sflag, size = 0x4, scoped, tag = 'scoped memory for tpu_custom_call.1']
  #allocation5 [shape = 'u8[512]{0}', space=smem, size = 0x200, scoped, tag = 'prefetched SMEM operand 0']
  #allocation8 [shape = 's32[]', space=sflag, size = 0x4, offset = 0, fixed_abs, tag = 'sflag constant byte address 0x0 - dummy sync flag']
  #allocation9 [shape = 's32[]', space=sflag, size = 0x4, offset = 0, fixed_abs, tag = 'sflag constant byte address 0x0 - dummy sync flag']
  #allocation10 [shape = 's32[]', space=sflag, size = 0x4, offset = 0, fixed_abs, tag = 'sflag constant byte address 0x0 - dummy sync flag']
  #allocation11 [shape = 's32[]', space=sflag, size = 0x4, offset = 0, fixed_abs, tag = 'sflag constant byte address 0x0 - dummy sync flag']
  #allocation12 [shape = 's32[]', space=sflag, size = 0x4, offset = 0, fixed_abs, tag = 'sflag constant byte address 0x0 - dummy sync flag']
  #allocation13 [shape = 's32[]', space=sflag, size = 0x4, offset = 0, fixed_abs, tag = 'sflag constant byte address 0x0 - dummy sync flag']
  #allocation14 [shape = 's32[]', space=sflag, size = 0x4, offset = 0, fixed_abs, tag = 'sflag constant byte address 0x0 - dummy sync flag']
  #allocation15 [shape = 's32[]', space=sflag, size = 0x4, offset = 0, fixed_abs, tag = 'sflag constant byte address 0x0 - dummy sync flag']
  #allocation16 [shape = 's32[]', space=sflag, size = 0x4, offset = 0, fixed_abs, tag = 'sflag constant byte address 0x0 - dummy sync flag']
  #allocation17 [shape = 's32[]', space=sflag, size = 0x4, offset = 0, fixed_abs, tag = 'sflag constant byte address 0x0 - dummy sync flag']
  #allocation18 [shape = 's32[]', space=sflag, size = 0x4, offset = 0, fixed_abs, tag = 'sflag constant byte address 0x0 - dummy sync flag']
  #allocation19 [shape = 's32[]', space=sflag, size = 0x4, offset = 0, fixed_abs, tag = 'sflag constant byte address 0x0 - dummy sync flag']
  #allocation20 [shape = 's32[]', space=sflag, size = 0x4, offset = 0, fixed_abs, tag = 'sflag constant byte address 0x0 - dummy sync flag']
  #allocation21 [shape = 's32[]', space=sflag, size = 0x4, offset = 0, fixed_abs, tag = 'sflag constant byte address 0x0 - dummy sync flag']
  #allocation22 [shape = 's32[]', space=sflag, size = 0x4, offset = 0, fixed_abs, tag = 'sflag constant byte address 0x0 - dummy sync flag']
  #allocation23 [shape = 's32[]', space=sflag, size = 0x4, offset = 0, fixed_abs, tag = 'sflag constant byte address 0x0 - dummy sync flag']
  %s0 = inlined_call_operand.vmem [shape: s32[30], index: 0, kind: input, shape index: {}]
  %s1 = inlined_call_operand.vmem [shape: f32[30,10,128], index: 1, kind: input, shape index: {}]
  %s2 = inlined_call_operand.vmem [shape: f32[1,128], index: 2, kind: input, shape index: {}]
  %s3 = inlined_call_operand.vmem [shape: f32[1,128], index: 3, kind: input, shape index: {}]
  %s4 = inlined_call_operand.vmem [shape: f32[128,128], index: 4, kind: input, shape index: {}]
  %s5 = inlined_call_operand.hbm [shape: f32[30,128], index: 5, kind: output, shape index: {}]
  %s6 = sld [smem:[#allocation0]]
  $region533: #{tpu_custom_call.1} parent=0
    _
  %s8 = ssub.s32 1, %s6
  %s9 = scalar_select 0, %s8, %s6
  %s11 = sshll.u32 %s0, 4
  %s12 = int_to_ptr.vmem [resolvable:$true] %s11
  %14 = dma.vmem_to_smem %s12, 16, [#allocation5], [#allocation4]
  %16 = dma.done [#allocation4], 16
  %17 = sfence
  $region1: #{tpu_custom_call.1} parent=0
    #allocation6 [shape = 'u8[8192]{0}', space=vmem, size = 0x2000, scoped, tag = 'output window, operand 0']
    #allocation7 [shape = 's32[2]{0}', space=sflag, size = 0x8, scoped, tag = 'scoped memory for tpu_custom_call.1']
    %18 = vsyncpa [#allocation7], 0
    %s19 = scalar_lea.sflag [#allocation7], 1
    %20 = vsyncpa %s19, 0
    loop: start=0, step=1, limit=6
    $region2: #{tpu_custom_call.1} parent=1 // loop_pre_header
      _
    $region3: #{tpu_custom_call.1} parent=1 // loop_header
      %s22 = sphi 0, %s26
      %p23 = scmp.ge.s32.totalorder %s22, 6
      %s29 = sphi 0, %s41
      %s30 = sphi 0, %s37
      %s31 = sphi 0, %s29
      %s32 = sphi 0, %s30
      %s33 = sphi 0, %s31
      %s34 = sphi 0, %s32
      %s42 = sphi 0, %s42
      %s44 = sphi 0, %s42
      %s45 = sphi 0, %s44
      %s59 = sphi 0, %s45
      %s63 = sphi 0, %s63
      %s65 = sphi 0, %s63
      %s66 = sphi 0, %s65
      %s80 = sphi 0, %s66
      %s84 = sphi 0, %s84
      %s86 = sphi 0, %s84
      %s87 = sphi 0, %s86
      %s101 = sphi 0, %s87
      %s111 = sphi 0, %s113
      %s114 = sphi 0, %s111
      %s115 = sphi 0, %s114
      %s131 = sphi 0, %s115
    $region4: #{tpu_custom_call.1} parent=1 // loop_header_branch
      %25 = sbr.rel (%p23) target = $region8
    $region5: #{tpu_custom_call.1} parent=1 // loop_body
      %s27 = ssub.s32 %s22, 1
      %s28 = ssub.s32 %s22, 2
      %s35 = sadd.s32 1, %s30
      %p36 = scmp.ge.s32.totalorder %s35, 2
      %s37 = scalar_select %p36, 0, %s35
      %s38 = sadd.s32 1, %s29
      %s39 = scalar_select %p36, %s38, %s29
      %p40 = scmp.ge.s32.totalorder %s39, 2
      %s41 = scalar_select %p40, 0, %s39
      %s43 = sadd.s32 %s42, 1
      %p46 = scmp.eq.s32.totalorder %s22, 3
      %p47 = scmp.ne.s32.totalorder %s42, %s44
      %p48 = scmp.eq.s32.totalorder %s22, 0
      %p49 = por %p47, %p48
      %p50 = scmp.ne.s32.totalorder %s42, %s44
      %p51 = scmp.eq.s32.totalorder %s27, 3
      %p52 = por %p50, %p51
      %p53 = scmp.ne.s32.totalorder %s44, %s45
      %p54 = scmp.eq.s32.totalorder %s27, 0
      %p55 = por %p53, %p54
      %p56 = scmp.ne.s32.totalorder %s44, %s45
      %p57 = scmp.eq.s32.totalorder %s28, 3
      %p58 = por %p56, %p57
      %p60 = scmp.ne.s32.totalorder %s45, %s59
      %p61 = scmp.eq.s32.totalorder %s28, 0
      %p62 = por %p60, %p61
      %s64 = sadd.s32 %s63, 1
      %p67 = scmp.eq.s32.totalorder %s22, 3
      %p68 = scmp.ne.s32.totalorder %s63, %s65
      %p69 = scmp.eq.s32.totalorder %s22, 0
      %p70 = por %p68, %p69
      %p71 = scmp.ne.s32.totalorder %s63, %s65
      %p72 = scmp.eq.s32.totalorder %s27, 3
      %p73 = por %p71, %p72
      %p74 = scmp.ne.s32.totalorder %s65, %s66
      %p75 = scmp.eq.s32.totalorder %s27, 0
      %p76 = por %p74, %p75
      %p77 = scmp.ne.s32.totalorder %s65, %s66
      %p78 = scmp.eq.s32.totalorder %s28, 3
      %p79 = por %p77, %p78
      %p81 = scmp.ne.s32.totalorder %s66, %s80
      %p82 = scmp.eq.s32.totalorder %s28, 0
      %p83 = por %p81, %p82
      %s85 = sadd.s32 %s84, 1
      %p88 = scmp.eq.s32.totalorder %s22, 3
      %p89 = scmp.ne.s32.totalorder %s84, %s86
      %p90 = scmp.eq.s32.totalorder %s22, 0
      %p91 = por %p89, %p90
      %p92 = scmp.ne.s32.totalorder %s84, %s86
      %p93 = scmp.eq.s32.totalorder %s27, 3
      %p94 = por %p92, %p93
      %p95 = scmp.ne.s32.totalorder %s86, %s87
      %p96 = scmp.eq.s32.totalorder %s27, 0
      %p97 = por %p95, %p96
      %p98 = scmp.ne.s32.totalorder %s86, %s87
      %p99 = scmp.eq.s32.totalorder %s28, 3
      %p100 = por %p98, %p99
      %p102 = scmp.ne.s32.totalorder %s87, %s101
      %p103 = scmp.eq.s32.totalorder %s28, 0
      %p104 = por %p102, %p103
      %s105 = smul.u32 %s29, 2
      %s106 = sadd.s32 %s105, %s30
      %s107 = smul.u32 %s41, 2
      %s108 = sadd.s32 %s107, %s37
      %s109 = ssub.s32 %s106, %s108
      %p110 = scmp.eq.s32.totalorder %s109, 0
      %s112 = sadd.s32 %s111, 1
      %s113 = scalar_select %p110, %s111, %s112
      %p116 = pneg %p110
      %p117 = scmp.eq.s32.totalorder %s22, 3
      %p118 = por %p116, %p117
      %p119 = scmp.ne.s32.totalorder %s111, %s114
      %p120 = scmp.eq.s32.totalorder %s22, 0
      %p121 = por %p119, %p120
      %p122 = scmp.ne.s32.totalorder %s111, %s114
      %p123 = scmp.eq.s32.totalorder %s27, 3
      %p124 = por %p122, %p123
      %p125 = scmp.ne.s32.totalorder %s114, %s115
      %p126 = scmp.eq.s32.totalorder %s27, 0
      %p127 = por %p125, %p126
      %p128 = scmp.ne.s32.totalorder %s114, %s115
      %p129 = scmp.eq.s32.totalorder %s28, 3
      %p130 = por %p128, %p129
      %p132 = scmp.ne.s32.totalorder %s115, %s131
      %p133 = scmp.eq.s32.totalorder %s28, 0
      %p134 = por %p132, %p133
      %p135 = scmp.le.s32.totalorder 1, %s22
      %p136 = scmp.lt.s32.totalorder %s22, 5
      %p137 = pnand %p135, %p136
      %p138 = pneg %p137
      // Predicated region
      $region9: #{tpu_custom_call.1} parent=5 // pred_check
        _
      $region10: #{tpu_custom_call.1} parent=5 // pred_check_branch
        %140 = sbr.rel (%p137) target = $region12
      $region11: #{tpu_custom_call.1} parent=5 // pred_region
        %s141 = ssub.s32 %s22, 1
        // Predicated region
        $region13: #{tpu_custom_call.1} parent=11 // pred_check
          %p142 = pneg %p55
        $region14: #{tpu_custom_call.1} parent=11 // pred_check_branch
          %144 = sbr.rel (%p142) target = $region16
        $region15: #{tpu_custom_call.1} parent=11 // pred_region
          _
        $region16: #{tpu_custom_call.1} parent=11 // pred_fallthru
          _
        // Predicated region
        $region17: #{tpu_custom_call.1} parent=11 // pred_check
          %p145 = pneg %p76
        $region18: #{tpu_custom_call.1} parent=11 // pred_check_branch
          %147 = sbr.rel (%p145) target = $region20
        $region19: #{tpu_custom_call.1} parent=11 // pred_region
          _
        $region20: #{tpu_custom_call.1} parent=11 // pred_fallthru
          _
        // Predicated region
        $region21: #{tpu_custom_call.1} parent=11 // pred_check
          %p148 = pneg %p97
        $region22: #{tpu_custom_call.1} parent=11 // pred_check_branch
          %150 = sbr.rel (%p148) target = $region24
        $region23: #{tpu_custom_call.1} parent=11 // pred_region
          _
        $region24: #{tpu_custom_call.1} parent=11 // pred_fallthru
          _
      $region12: #{tpu_custom_call.1} parent=5 // pred_fallthru
        _
      %p151 = scmp.lt.s32.totalorder %s22, 4
      // Predicated region
      $region25: #{tpu_custom_call.1} parent=5 // pred_check
        %p152 = pneg %p151
      $region26: #{tpu_custom_call.1} parent=5 // pred_check_branch
        %154 = sbr.rel (%p152) target = $region28
      $region27: #{tpu_custom_call.1} parent=5 // pred_region
        _
      $region28: #{tpu_custom_call.1} parent=5 // pred_fallthru
        _
      %p155 = scmp.le.s32.totalorder 1, %s22
      %p156 = scmp.lt.s32.totalorder %s22, 5
      %p157 = pnand %p155, %p156
      %p158 = pneg %p157
      // Predicated region
      $region29: #{tpu_custom_call.1} parent=5 // pred_check
        _
      $region30: #{tpu_custom_call.1} parent=5 // pred_check_branch
        %160 = sbr.rel (%p157) target = $region32
      $region31: #{tpu_custom_call.1} parent=5 // pred_region
        %s161 = ssub.s32 %s22, 1
        %p162 = pneg %p55
        %p163 = pneg %p52
        %p164 = pneg %p76
        %p165 = pneg %p73
        %p166 = pneg %p97
        %p167 = pneg %p94
        %p168 = pneg %p127
        %p169 = pneg %p124
        %s170 = sand.u32 %s114, 1
        %s171 = scalar_lea.sflag [#allocation7], %s170
        %s172 = sand.u32 %s114, 1
        %s173 = smul.addr %s172, 8
        %s174 = scalar_lea.vmem [#allocation6], %s173
        %s175 = smul.u32 %s31, 2
        %s176 = sadd.s32 %s175, %s32
        %p177 = scmp.lt.s32.totalorder %s32, 0
        %s178 = ssub.s32 0, %s32
        %s179 = scalar_select %p177, %s178, %s32
        %s180 = sand.u32 %s179, 1
        %s181 = ssub.s32 0, %s180
        %s182 = scalar_select %p177, %s181, %s180
        %p183 = scmp.ne.s32.totalorder %s182, 0
        %p184 = scmp.lt.s32.totalorder %s182, 0
        %p185 = pnand %p184, %p183
        %p186 = pneg %p185
        %s187 = sadd.s32 %s182, 2
        %s188 = scalar_select %p186, %s187, %s182
        %p189 = scmp.eq.s32.totalorder %s32, 0
        // Predicated region
        $region33: #{tpu_custom_call.1} parent=31 // pred_check
          %p190 = pneg %p189
        $region34: #{tpu_custom_call.1} parent=31 // pred_check_branch
          %192 = sbr.rel (%p190) target = $region36
        $region35: #{tpu_custom_call.1} parent=31 // pred_region
          %s193 = smul.u32 %s31, 16
          %p194 = scmp.lt.s32.totalorder %s193, 29
          %s195 = scalar_select %p194, %s193, 29
          %s196 = sld [smem:[#allocation5 + %s195]]
          %p197 = scmp.gt.s32.totalorder %s196, 0
          %s198 = scalar_select %p197, %s196, 0
          %p199 = scmp.lt.s32.totalorder %s198, 9
          %s200 = scalar_select %p199, %s198, 9
          %s201 = smul.u32 %s195, 16
          %s202 = sadd.s32 %s200, %s201
          %s203 = scalar_lea.vmem %s1, %s202
          // Predicated region
          $region37: #{tpu_custom_call.1} parent=35 // pred_check
            _
          $region38: #{tpu_custom_call.1} parent=35 // pred_check_branch
            %205 = sbr.rel target = $region40
          $region39: #{tpu_custom_call.1} parent=35 // pred_region
            // Predicated region
            $region52: #{tpu_custom_call.1} parent=39 // pred_check
              _
            $region53: #{tpu_custom_call.1} parent=39 // pred_check_branch
              %221 = sbr.rel (0) target = $region55
            $region54: #{tpu_custom_call.1} parent=39 // pred_region
              %s223 = ssub.s32 2, 1
              loop: start=0, step=1, limit=1
              $region56: #{tpu_custom_call.1} parent=54 // loop_pre_header
                _
              $region57: #{tpu_custom_call.1} parent=54 // loop_header
                %s225 = sphi 0, %s229
                %p226 = scmp.ge.s32.totalorder %s225, 1
                %s230 = sphi %s203, %s203
                %s231 = sphi [#allocation2], [#allocation2]
              $region58: #{tpu_custom_call.1} parent=54 // loop_header_branch
                %228 = sbr.rel (%p226) target = $region62
              $region59: #{tpu_custom_call.1} parent=54 // loop_body
                %v232 = vld [vmem:[%s230] sm:%s223]
                %233 = vst [vmem:[%s231] sm:%s223] %v232
              $region60: #{tpu_custom_call.1} parent=54 // loop_footer
                %s229 = sadd.s32 1, %s225
              $region61: #{tpu_custom_call.1} parent=54 // loop_footer_branch
                %224 = sbr.rel target = $region57
              $region62: #{tpu_custom_call.1} parent=54 // loop_exit
                _
            $region55: #{tpu_custom_call.1} parent=39 // pred_fallthru
              _
          $region40: #{tpu_custom_call.1} parent=35 // pred_fallthru
            _
          // Predicated region
          $region41: #{tpu_custom_call.1} parent=35 // pred_check
            _
          $region42: #{tpu_custom_call.1} parent=35 // pred_check_branch
            %207 = sbr.rel (0) target = $region44
          $region43: #{tpu_custom_call.1} parent=35 // pred_region
            %s209 = ssub.s32 2, 1
            loop: start=0, step=1, limit=1
            $region45: #{tpu_custom_call.1} parent=43 // loop_pre_header
              _
            $region46: #{tpu_custom_call.1} parent=43 // loop_header
              %s211 = sphi 0, %s215
              %p212 = scmp.ge.s32.totalorder %s211, 1
              %s216 = sphi %s203, %s203
              %s217 = sphi [#allocation2], [#allocation2]
            $region47: #{tpu_custom_call.1} parent=43 // loop_header_branch
              %214 = sbr.rel (%p212) target = $region51
            $region48: #{tpu_custom_call.1} parent=43 // loop_body
              %v218 = vld [vmem:[%s216] sm:%s209]
              %219 = vst [vmem:[%s217] sm:%s209] %v218
            $region49: #{tpu_custom_call.1} parent=43 // loop_footer
              %s215 = sadd.s32 1, %s211
            $region50: #{tpu_custom_call.1} parent=43 // loop_footer_branch
              %210 = sbr.rel target = $region46
            $region51: #{tpu_custom_call.1} parent=43 // loop_exit
              _
          $region44: #{tpu_custom_call.1} parent=35 // pred_fallthru
            _
          // Predicated region
          $region63: #{tpu_custom_call.1} parent=35 // pred_check
            _
          $region64: #{tpu_custom_call.1} parent=35 // pred_check_branch
            %236 = sbr.rel (0) target = $region66
          $region65: #{tpu_custom_call.1} parent=35 // pred_region
            %237 = vsyncadd [#allocation3], 16
          $region66: #{tpu_custom_call.1} parent=35 // pred_fallthru
            _
          %s238 = sadd.s32 %s193, 1
          %p239 = scmp.lt.s32.totalorder %s238, 29
          %s240 = scalar_select %p239, %s238, 29
          %s241 = sld [smem:[#allocation5 + %s240]]
          %p242 = scmp.gt.s32.totalorder %s241, 0
          %s243 = scalar_select %p242, %s241, 0
          %p244 = scmp.lt.s32.totalorder %s243, 9
          %s245 = scalar_select %p244, %s243, 9
          %s246 = smul.u32 %s240, 16
          %s247 = sadd.s32 %s245, %s246
          %s248 = scalar_lea.vmem %s1, %s247
          %s249 = scalar_lea.vmem [#allocation2], 1
          // Predicated region
          $region67: #{tpu_custom_call.1} parent=35 // pred_check
            _
          $region68: #{tpu_custom_call.1} parent=35 // pred_check_branch
            %251 = sbr.rel target = $region70
          $region69: #{tpu_custom_call.1} parent=35 // pred_region
            // Predicated region
            $region82: #{tpu_custom_call.1} parent=69 // pred_check
              _
            $region83: #{tpu_custom_call.1} parent=69 // pred_check_branch
              %267 = sbr.rel (0) target = $region85
            $region84: #{tpu_custom_call.1} parent=69 // pred_region
              %s269 = ssub.s32 2, 1
              loop: start=0, step=1, limit=1
              $region86: #{tpu_custom_call.1} parent=84 // loop_pre_header
                _
              $region87: #{tpu_custom_call.1} parent=84 // loop_header
                %s271 = sphi 0, %s275
                %p272 = scmp.ge.s32.totalorder %s271, 1
                %s276 = sphi %s248, %s248
                %s277 = sphi %s249, %s249
              $region88: #{tpu_custom_call.1} parent=84 // loop_header_branch
                %274 = sbr.rel (%p272) target = $region92
              $region89: #{tpu_custom_call.1} parent=84 // loop_body
                %v278 = vld [vmem:[%s276] sm:%s269]
                %279 = vst [vmem:[%s277] sm:%s269] %v278
              $region90: #{tpu_custom_call.1} parent=84 // loop_footer
                %s275 = sadd.s32 1, %s271
              $region91: #{tpu_custom_call.1} parent=84 // loop_footer_branch
                %270 = sbr.rel target = $region87
              $region92: #{tpu_custom_call.1} parent=84 // loop_exit
                _
            $region85: #{tpu_custom_call.1} parent=69 // pred_fallthru
              _
          $region70: #{tpu_custom_call.1} parent=35 // pred_fallthru
            _
          // Predicated region
          $region71: #{tpu_custom_call.1} parent=35 // pred_check
            _
          $region72: #{tpu_custom_call.1} parent=35 // pred_check_branch
            %253 = sbr.rel (0) target = $region74
          $region73: #{tpu_custom_call.1} parent=35 // pred_region
            %s255 = ssub.s32 2, 1
            loop: start=0, step=1, limit=1
            $region75: #{tpu_custom_call.1} parent=73 // loop_pre_header
              _
            $region76: #{tpu_custom_call.1} parent=73 // loop_header
              %s257 = sphi 0, %s261
              %p258 = scmp.ge.s32.totalorder %s257, 1
              %s262 = sphi %s248, %s248
              %s263 = sphi %s249, %s249
            $region77: #{tpu_custom_call.1} parent=73 // loop_header_branch
              %260 = sbr.rel (%p258) target = $region81
            $region78: #{tpu_custom_call.1} parent=73 // loop_body
              %v264 = vld [vmem:[%s262] sm:%s255]
              %265 = vst [vmem:[%s263] sm:%s255] %v264
            $region79: #{tpu_custom_call.1} parent=73 // loop_footer
              %s261 = sadd.s32 1, %s257
            $region80: #{tpu_custom_call.1} parent=73 // loop_footer_branch
              %256 = sbr.rel target = $region76
            $region81: #{tpu_custom_call.1} parent=73 // loop_exit
              _
          $region74: #{tpu_custom_call.1} parent=35 // pred_fallthru
            _
          // Predicated region
          $region93: #{tpu_custom_call.1} parent=35 // pred_check
            _
          $region94: #{tpu_custom_call.1} parent=35 // pred_check_branch
            %282 = sbr.rel (0) target = $region96
          $region95: #{tpu_custom_call.1} parent=35 // pred_region
            %283 = vsyncadd [#allocation3], 16
          $region96: #{tpu_custom_call.1} parent=35 // pred_fallthru
            _
          %s284 = sadd.s32 %s193, 2
          %p285 = scmp.lt.s32.totalorder %s284, 29
          %s286 = scalar_select %p285, %s284, 29
          %s287 = sld [smem:[#allocation5 + %s286]]
          %p288 = scmp.gt.s32.totalorder %s287, 0
          %s289 = scalar_select %p288, %s287, 0
          %p290 = scmp.lt.s32.totalorder %s289, 9
          %s291 = scalar_select %p290, %s289, 9
          %s292 = smul.u32 %s286, 16
          %s293 = sadd.s32 %s291, %s292
          %s294 = scalar_lea.vmem %s1, %s293
          %s295 = scalar_lea.vmem [#allocation2], 2
          // Predicated region
          $region97: #{tpu_custom_call.1} parent=35 // pred_check
            _
          $region98: #{tpu_custom_call.1} parent=35 // pred_check_branch
            %297 = sbr.rel target = $region100
          $region99: #{tpu_custom_call.1} parent=35 // pred_region
            // Predicated region
            $region112: #{tpu_custom_call.1} parent=99 // pred_check
              _
            $region113: #{tpu_custom_call.1} parent=99 // pred_check_branch
              %313 = sbr.rel (0) target = $region115
            $region114: #{tpu_custom_call.1} parent=99 // pred_region
              %s315 = ssub.s32 2, 1
              loop: start=0, step=1, limit=1
              $region116: #{tpu_custom_call.1} parent=114 // loop_pre_header
                _
              $region117: #{tpu_custom_call.1} parent=114 // loop_header
                %s317 = sphi 0, %s321
                %p318 = scmp.ge.s32.totalorder %s317, 1
                %s322 = sphi %s294, %s294
                %s323 = sphi %s295, %s295
              $region118: #{tpu_custom_call.1} parent=114 // loop_header_branch
                %320 = sbr.rel (%p318) target = $region122
              $region119: #{tpu_custom_call.1} parent=114 // loop_body
                %v324 = vld [vmem:[%s322] sm:%s315]
                %325 = vst [vmem:[%s323] sm:%s315] %v324
              $region120: #{tpu_custom_call.1} parent=114 // loop_footer
                %s321 = sadd.s32 1, %s317
              $region121: #{tpu_custom_call.1} parent=114 // loop_footer_branch
                %316 = sbr.rel target = $region117
              $region122: #{tpu_custom_call.1} parent=114 // loop_exit
                _
            $region115: #{tpu_custom_call.1} parent=99 // pred_fallthru
              _
          $region100: #{tpu_custom_call.1} parent=35 // pred_fallthru
            _
          // Predicated region
          $region101: #{tpu_custom_call.1} parent=35 // pred_check
            _
          $region102: #{tpu_custom_call.1} parent=35 // pred_check_branch
            %299 = sbr.rel (0) target = $region104
          $region103: #{tpu_custom_call.1} parent=35 // pred_region
            %s301 = ssub.s32 2, 1
            loop: start=0, step=1, limit=1
            $region105: #{tpu_custom_call.1} parent=103 // loop_pre_header
              _
            $region106: #{tpu_custom_call.1} parent=103 // loop_header
              %s303 = sphi 0, %s307
              %p304 = scmp.ge.s32.totalorder %s303, 1
              %s308 = sphi %s294, %s294
              %s309 = sphi %s295, %s295
            $region107: #{tpu_custom_call.1} parent=103 // loop_header_branch
              %306 = sbr.rel (%p304) target = $region111
            $region108: #{tpu_custom_call.1} parent=103 // loop_body
              %v310 = vld [vmem:[%s308] sm:%s301]
              %311 = vst [vmem:[%s309] sm:%s301] %v310
            $region109: #{tpu_custom_call.1} parent=103 // loop_footer
              %s307 = sadd.s32 1, %s303
            $region110: #{tpu_custom_call.1} parent=103 // loop_footer_branch
              %302 = sbr.rel target = $region106
            $region111: #{tpu_custom_call.1} parent=103 // loop_exit
              _
          $region104: #{tpu_custom_call.1} parent=35 // pred_fallthru
            _
          // Predicated region
          $region123: #{tpu_custom_call.1} parent=35 // pred_check
            _
          $region124: #{tpu_custom_call.1} parent=35 // pred_check_branch
            %328 = sbr.rel (0) target = $region126
          $region125: #{tpu_custom_call.1} parent=35 // pred_region
            %329 = vsyncadd [#allocation3], 16
          $region126: #{tpu_custom_call.1} parent=35 // pred_fallthru
            _
          %s330 = sadd.s32 %s193, 3
          %p331 = scmp.lt.s32.totalorder %s330, 29
          %s332 = scalar_select %p331, %s330, 29
          %s333 = sld [smem:[#allocation5 + %s332]]
          %p334 = scmp.gt.s32.totalorder %s333, 0
          %s335 = scalar_select %p334, %s333, 0
          %p336 = scmp.lt.s32.totalorder %s335, 9
          %s337 = scalar_select %p336, %s335, 9
          %s338 = smul.u32 %s332, 16
          %s339 = sadd.s32 %s337, %s338
          %s340 = scalar_lea.vmem %s1, %s339
          %s341 = scalar_lea.vmem [#allocation2], 3
          // Predicated region
          $region127: #{tpu_custom_call.1} parent=35 // pred_check
            _
          $region128: #{tpu_custom_call.1} parent=35 // pred_check_branch
            %343 = sbr.rel target = $region130
          $region129: #{tpu_custom_call.1} parent=35 // pred_region
            // Predicated region
            $region142: #{tpu_custom_call.1} parent=129 // pred_check
              _
            $region143: #{tpu_custom_call.1} parent=129 // pred_check_branch
              %359 = sbr.rel (0) target = $region145
            $region144: #{tpu_custom_call.1} parent=129 // pred_region
              %s361 = ssub.s32 2, 1
              loop: start=0, step=1, limit=1
              $region146: #{tpu_custom_call.1} parent=144 // loop_pre_header
                _
              $region147: #{tpu_custom_call.1} parent=144 // loop_header
                %s363 = sphi 0, %s367
                %p364 = scmp.ge.s32.totalorder %s363, 1
                %s368 = sphi %s340, %s340
                %s369 = sphi %s341, %s341
              $region148: #{tpu_custom_call.1} parent=144 // loop_header_branch
                %366 = sbr.rel (%p364) target = $region152
              $region149: #{tpu_custom_call.1} parent=144 // loop_body
                %v370 = vld [vmem:[%s368] sm:%s361]
                %371 = vst [vmem:[%s369] sm:%s361] %v370
              $region150: #{tpu_custom_call.1} parent=144 // loop_footer
                %s367 = sadd.s32 1, %s363
              $region151: #{tpu_custom_call.1} parent=144 // loop_footer_branch
                %362 = sbr.rel target = $region147
              $region152: #{tpu_custom_call.1} parent=144 // loop_exit
                _
            $region145: #{tpu_custom_call.1} parent=129 // pred_fallthru
              _
          $region130: #{tpu_custom_call.1} parent=35 // pred_fallthru
            _
          // Predicated region
          $region131: #{tpu_custom_call.1} parent=35 // pred_check
            _
          $region132: #{tpu_custom_call.1} parent=35 // pred_check_branch
            %345 = sbr.rel (0) target = $region134
          $region133: #{tpu_custom_call.1} parent=35 // pred_region
            %s347 = ssub.s32 2, 1
            loop: start=0, step=1, limit=1
            $region135: #{tpu_custom_call.1} parent=133 // loop_pre_header
              _
            $region136: #{tpu_custom_call.1} parent=133 // loop_header
              %s349 = sphi 0, %s353
              %p350 = scmp.ge.s32.totalorder %s349, 1
              %s354 = sphi %s340, %s340
              %s355 = sphi %s341, %s341
            $region137: #{tpu_custom_call.1} parent=133 // loop_header_branch
              %352 = sbr.rel (%p350) target = $region141
            $region138: #{tpu_custom_call.1} parent=133 // loop_body
              %v356 = vld [vmem:[%s354] sm:%s347]
              %357 = vst [vmem:[%s355] sm:%s347] %v356
            $region139: #{tpu_custom_call.1} parent=133 // loop_footer
              %s353 = sadd.s32 1, %s349
            $region140: #{tpu_custom_call.1} parent=133 // loop_footer_branch
              %348 = sbr.rel target = $region136
            $region141: #{tpu_custom_call.1} parent=133 // loop_exit
              _
          $region134: #{tpu_custom_call.1} parent=35 // pred_fallthru
            _
          // Predicated region
          $region153: #{tpu_custom_call.1} parent=35 // pred_check
            _
          $region154: #{tpu_custom_call.1} parent=35 // pred_check_branch
            %374 = sbr.rel (0) target = $region156
          $region155: #{tpu_custom_call.1} parent=35 // pred_region
            %375 = vsyncadd [#allocation3], 16
          $region156: #{tpu_custom_call.1} parent=35 // pred_fallthru
            _
          %s376 = sadd.s32 %s193, 4
          %p377 = scmp.lt.s32.totalorder %s376, 29
          %s378 = scalar_select %p377, %s376, 29
          %s379 = sld [smem:[#allocation5 + %s378]]
          %p380 = scmp.gt.s32.totalorder %s379, 0
          %s381 = scalar_select %p380, %s379, 0
          %p382 = scmp.lt.s32.totalorder %s381, 9
          %s383 = scalar_select %p382, %s381, 9
          %s384 = smul.u32 %s378, 16
          %s385 = sadd.s32 %s383, %s384
          %s386 = scalar_lea.vmem %s1, %s385
          %s387 = scalar_lea.vmem [#allocation2], 4
          // Predicated region
          $region157: #{tpu_custom_call.1} parent=35 // pred_check
            _
          $region158: #{tpu_custom_call.1} parent=35 // pred_check_branch
            %389 = sbr.rel target = $region160
          $region159: #{tpu_custom_call.1} parent=35 // pred_region
            // Predicated region
            $region172: #{tpu_custom_call.1} parent=159 // pred_check
              _
            $region173: #{tpu_custom_call.1} parent=159 // pred_check_branch
              %405 = sbr.rel (0) target = $region175
            $region174: #{tpu_custom_call.1} parent=159 // pred_region
              %s407 = ssub.s32 2, 1
              loop: start=0, step=1, limit=1
              $region176: #{tpu_custom_call.1} parent=174 // loop_pre_header
                _
              $region177: #{tpu_custom_call.1} parent=174 // loop_header
                %s409 = sphi 0, %s413
                %p410 = scmp.ge.s32.totalorder %s409, 1
                %s414 = sphi %s386, %s386
                %s415 = sphi %s387, %s387
              $region178: #{tpu_custom_call.1} parent=174 // loop_header_branch
                %412 = sbr.rel (%p410) target = $region182
              $region179: #{tpu_custom_call.1} parent=174 // loop_body
                %v416 = vld [vmem:[%s414] sm:%s407]
                %417 = vst [vmem:[%s415] sm:%s407] %v416
              $region180: #{tpu_custom_call.1} parent=174 // loop_footer
                %s413 = sadd.s32 1, %s409
              $region181: #{tpu_custom_call.1} parent=174 // loop_footer_branch
                %408 = sbr.rel target = $region177
              $region182: #{tpu_custom_call.1} parent=174 // loop_exit
                _
            $region175: #{tpu_custom_call.1} parent=159 // pred_fallthru
              _
          $region160: #{tpu_custom_call.1} parent=35 // pred_fallthru
            _
          // Predicated region
          $region161: #{tpu_custom_call.1} parent=35 // pred_check
            _
          $region162: #{tpu_custom_call.1} parent=35 // pred_check_branch
            %391 = sbr.rel (0) target = $region164
          $region163: #{tpu_custom_call.1} parent=35 // pred_region
            %s393 = ssub.s32 2, 1
            loop: start=0, step=1, limit=1
            $region165: #{tpu_custom_call.1} parent=163 // loop_pre_header
              _
            $region166: #{tpu_custom_call.1} parent=163 // loop_header
              %s395 = sphi 0, %s399
              %p396 = scmp.ge.s32.totalorder %s395, 1
              %s400 = sphi %s386, %s386
              %s401 = sphi %s387, %s387
            $region167: #{tpu_custom_call.1} parent=163 // loop_header_branch
              %398 = sbr.rel (%p396) target = $region171
            $region168: #{tpu_custom_call.1} parent=163 // loop_body
              %v402 = vld [vmem:[%s400] sm:%s393]
              %403 = vst [vmem:[%s401] sm:%s393] %v402
            $region169: #{tpu_custom_call.1} parent=163 // loop_footer
              %s399 = sadd.s32 1, %s395
            $region170: #{tpu_custom_call.1} parent=163 // loop_footer_branch
              %394 = sbr.rel target = $region166
            $region171: #{tpu_custom_call.1} parent=163 // loop_exit
              _
          $region164: #{tpu_custom_call.1} parent=35 // pred_fallthru
            _
          // Predicated region
          $region183: #{tpu_custom_call.1} parent=35 // pred_check
            _
          $region184: #{tpu_custom_call.1} parent=35 // pred_check_branch
            %420 = sbr.rel (0) target = $region186
          $region185: #{tpu_custom_call.1} parent=35 // pred_region
            %421 = vsyncadd [#allocation3], 16
          $region186: #{tpu_custom_call.1} parent=35 // pred_fallthru
            _
          %s422 = sadd.s32 %s193, 5
          %p423 = scmp.lt.s32.totalorder %s422, 29
          %s424 = scalar_select %p423, %s422, 29
          %s425 = sld [smem:[#allocation5 + %s424]]
          %p426 = scmp.gt.s32.totalorder %s425, 0
          %s427 = scalar_select %p426, %s425, 0
          %p428 = scmp.lt.s32.totalorder %s427, 9
          %s429 = scalar_select %p428, %s427, 9
          %s430 = smul.u32 %s424, 16
          %s431 = sadd.s32 %s429, %s430
          %s432 = scalar_lea.vmem %s1, %s431
          %s433 = scalar_lea.vmem [#allocation2], 5
          // Predicated region
          $region187: #{tpu_custom_call.1} parent=35 // pred_check
            _
          $region188: #{tpu_custom_call.1} parent=35 // pred_check_branch
            %435 = sbr.rel target = $region190
          $region189: #{tpu_custom_call.1} parent=35 // pred_region
            // Predicated region
            $region202: #{tpu_custom_call.1} parent=189 // pred_check
              _
            $region203: #{tpu_custom_call.1} parent=189 // pred_check_branch
              %451 = sbr.rel (0) target = $region205
            $region204: #{tpu_custom_call.1} parent=189 // pred_region
              %s453 = ssub.s32 2, 1
              loop: start=0, step=1, limit=1
              $region206: #{tpu_custom_call.1} parent=204 // loop_pre_header
                _
              $region207: #{tpu_custom_call.1} parent=204 // loop_header
                %s455 = sphi 0, %s459
                %p456 = scmp.ge.s32.totalorder %s455, 1
                %s460 = sphi %s432, %s432
                %s461 = sphi %s433, %s433
              $region208: #{tpu_custom_call.1} parent=204 // loop_header_branch
                %458 = sbr.rel (%p456) target = $region212
              $region209: #{tpu_custom_call.1} parent=204 // loop_body
                %v462 = vld [vmem:[%s460] sm:%s453]
                %463 = vst [vmem:[%s461] sm:%s453] %v462
              $region210: #{tpu_custom_call.1} parent=204 // loop_footer
                %s459 = sadd.s32 1, %s455
              $region211: #{tpu_custom_call.1} parent=204 // loop_footer_branch
                %454 = sbr.rel target = $region207
              $region212: #{tpu_custom_call.1} parent=204 // loop_exit
                _
            $region205: #{tpu_custom_call.1} parent=189 // pred_fallthru
              _
          $region190: #{tpu_custom_call.1} parent=35 // pred_fallthru
            _
          // Predicated region
          $region191: #{tpu_custom_call.1} parent=35 // pred_check
            _
          $region192: #{tpu_custom_call.1} parent=35 // pred_check_branch
            %437 = sbr.rel (0) target = $region194
          $region193: #{tpu_custom_call.1} parent=35 // pred_region
            %s439 = ssub.s32 2, 1
            loop: start=0, step=1, limit=1
            $region195: #{tpu_custom_call.1} parent=193 // loop_pre_header
              _
            $region196: #{tpu_custom_call.1} parent=193 // loop_header
              %s441 = sphi 0, %s445
              %p442 = scmp.ge.s32.totalorder %s441, 1
              %s446 = sphi %s432, %s432
              %s447 = sphi %s433, %s433
            $region197: #{tpu_custom_call.1} parent=193 // loop_header_branch
              %444 = sbr.rel (%p442) target = $region201
            $region198: #{tpu_custom_call.1} parent=193 // loop_body
              %v448 = vld [vmem:[%s446] sm:%s439]
              %449 = vst [vmem:[%s447] sm:%s439] %v448
            $region199: #{tpu_custom_call.1} parent=193 // loop_footer
              %s445 = sadd.s32 1, %s441
            $region200: #{tpu_custom_call.1} parent=193 // loop_footer_branch
              %440 = sbr.rel target = $region196
            $region201: #{tpu_custom_call.1} parent=193 // loop_exit
              _
          $region194: #{tpu_custom_call.1} parent=35 // pred_fallthru
            _
          // Predicated region
          $region213: #{tpu_custom_call.1} parent=35 // pred_check
            _
          $region214: #{tpu_custom_call.1} parent=35 // pred_check_branch
            %466 = sbr.rel (0) target = $region216
          $region215: #{tpu_custom_call.1} parent=35 // pred_region
            %467 = vsyncadd [#allocation3], 16
          $region216: #{tpu_custom_call.1} parent=35 // pred_fallthru
            _
          %s468 = sadd.s32 %s193, 6
          %p469 = scmp.lt.s32.totalorder %s468, 29
          %s470 = scalar_select %p469, %s468, 29
          %s471 = sld [smem:[#allocation5 + %s470]]
          %p472 = scmp.gt.s32.totalorder %s471, 0
          %s473 = scalar_select %p472, %s471, 0
          %p474 = scmp.lt.s32.totalorder %s473, 9
          %s475 = scalar_select %p474, %s473, 9
          %s476 = smul.u32 %s470, 16
          %s477 = sadd.s32 %s475, %s476
          %s478 = scalar_lea.vmem %s1, %s477
          %s479 = scalar_lea.vmem [#allocation2], 6
          // Predicated region
          $region217: #{tpu_custom_call.1} parent=35 // pred_check
            _
          $region218: #{tpu_custom_call.1} parent=35 // pred_check_branch
            %481 = sbr.rel target = $region220
          $region219: #{tpu_custom_call.1} parent=35 // pred_region
            // Predicated region
            $region232: #{tpu_custom_call.1} parent=219 // pred_check
              _
            $region233: #{tpu_custom_call.1} parent=219 // pred_check_branch
              %497 = sbr.rel (0) target = $region235
            $region234: #{tpu_custom_call.1} parent=219 // pred_region
              %s499 = ssub.s32 2, 1
              loop: start=0, step=1, limit=1
              $region236: #{tpu_custom_call.1} parent=234 // loop_pre_header
                _
              $region237: #{tpu_custom_call.1} parent=234 // loop_header
                %s501 = sphi 0, %s505
                %p502 = scmp.ge.s32.totalorder %s501, 1
                %s506 = sphi %s478, %s478
                %s507 = sphi %s479, %s479
              $region238: #{tpu_custom_call.1} parent=234 // loop_header_branch
                %504 = sbr.rel (%p502) target = $region242
              $region239: #{tpu_custom_call.1} parent=234 // loop_body
                %v508 = vld [vmem:[%s506] sm:%s499]
                %509 = vst [vmem:[%s507] sm:%s499] %v508
              $region240: #{tpu_custom_call.1} parent=234 // loop_footer
                %s505 = sadd.s32 1, %s501
              $region241: #{tpu_custom_call.1} parent=234 // loop_footer_branch
                %500 = sbr.rel target = $region237
              $region242: #{tpu_custom_call.1} parent=234 // loop_exit
                _
            $region235: #{tpu_custom_call.1} parent=219 // pred_fallthru
              _
          $region220: #{tpu_custom_call.1} parent=35 // pred_fallthru
            _
          // Predicated region
          $region221: #{tpu_custom_call.1} parent=35 // pred_check
            _
          $region222: #{tpu_custom_call.1} parent=35 // pred_check_branch
            %483 = sbr.rel (0) target = $region224
          $region223: #{tpu_custom_call.1} parent=35 // pred_region
            %s485 = ssub.s32 2, 1
            loop: start=0, step=1, limit=1
            $region225: #{tpu_custom_call.1} parent=223 // loop_pre_header
              _
            $region226: #{tpu_custom_call.1} parent=223 // loop_header
              %s487 = sphi 0, %s491
              %p488 = scmp.ge.s32.totalorder %s487, 1
              %s492 = sphi %s478, %s478
              %s493 = sphi %s479, %s479
            $region227: #{tpu_custom_call.1} parent=223 // loop_header_branch
              %490 = sbr.rel (%p488) target = $region231
            $region228: #{tpu_custom_call.1} parent=223 // loop_body
              %v494 = vld [vmem:[%s492] sm:%s485]
              %495 = vst [vmem:[%s493] sm:%s485] %v494
            $region229: #{tpu_custom_call.1} parent=223 // loop_footer
              %s491 = sadd.s32 1, %s487
            $region230: #{tpu_custom_call.1} parent=223 // loop_footer_branch
              %486 = sbr.rel target = $region226
            $region231: #{tpu_custom_call.1} parent=223 // loop_exit
              _
          $region224: #{tpu_custom_call.1} parent=35 // pred_fallthru
            _
          // Predicated region
          $region243: #{tpu_custom_call.1} parent=35 // pred_check
            _
          $region244: #{tpu_custom_call.1} parent=35 // pred_check_branch
            %512 = sbr.rel (0) target = $region246
          $region245: #{tpu_custom_call.1} parent=35 // pred_region
            %513 = vsyncadd [#allocation3], 16
          $region246: #{tpu_custom_call.1} parent=35 // pred_fallthru
            _
          %s514 = sadd.s32 %s193, 7
          %p515 = scmp.lt.s32.totalorder %s514, 29
          %s516 = scalar_select %p515, %s514, 29
          %s517 = sld [smem:[#allocation5 + %s516]]
          %p518 = scmp.gt.s32.totalorder %s517, 0
          %s519 = scalar_select %p518, %s517, 0
          %p520 = scmp.lt.s32.totalorder %s519, 9
          %s521 = scalar_select %p520, %s519, 9
          %s522 = smul.u32 %s516, 16
          %s523 = sadd.s32 %s521, %s522
          %s524 = scalar_lea.vmem %s1, %s523
          %s525 = scalar_lea.vmem [#allocation2], 7
          // Predicated region
          $region247: #{tpu_custom_call.1} parent=35 // pred_check
            _
          $region248: #{tpu_custom_call.1} parent=35 // pred_check_branch
            %527 = sbr.rel target = $region250
          $region249: #{tpu_custom_call.1} parent=35 // pred_region
            // Predicated region
            $region262: #{tpu_custom_call.1} parent=249 // pred_check
              _
            $region263: #{tpu_custom_call.1} parent=249 // pred_check_branch
              %543 = sbr.rel (0) target = $region265
            $region264: #{tpu_custom_call.1} parent=249 // pred_region
              %s545 = ssub.s32 2, 1
              loop: start=0, step=1, limit=1
              $region266: #{tpu_custom_call.1} parent=264 // loop_pre_header
                _
              $region267: #{tpu_custom_call.1} parent=264 // loop_header
                %s547 = sphi 0, %s551
                %p548 = scmp.ge.s32.totalorder %s547, 1
                %s552 = sphi %s524, %s524
                %s553 = sphi %s525, %s525
              $region268: #{tpu_custom_call.1} parent=264 // loop_header_branch
                %550 = sbr.rel (%p548) target = $region272
              $region269: #{tpu_custom_call.1} parent=264 // loop_body
                %v554 = vld [vmem:[%s552] sm:%s545]
                %555 = vst [vmem:[%s553] sm:%s545] %v554
              $region270: #{tpu_custom_call.1} parent=264 // loop_footer
                %s551 = sadd.s32 1, %s547
              $region271: #{tpu_custom_call.1} parent=264 // loop_footer_branch
                %546 = sbr.rel target = $region267
              $region272: #{tpu_custom_call.1} parent=264 // loop_exit
                _
            $region265: #{tpu_custom_call.1} parent=249 // pred_fallthru
              _
          $region250: #{tpu_custom_call.1} parent=35 // pred_fallthru
            _
          // Predicated region
          $region251: #{tpu_custom_call.1} parent=35 // pred_check
            _
          $region252: #{tpu_custom_call.1} parent=35 // pred_check_branch
            %529 = sbr.rel (0) target = $region254
          $region253: #{tpu_custom_call.1} parent=35 // pred_region
            %s531 = ssub.s32 2, 1
            loop: start=0, step=1, limit=1
            $region255: #{tpu_custom_call.1} parent=253 // loop_pre_header
              _
            $region256: #{tpu_custom_call.1} parent=253 // loop_header
              %s533 = sphi 0, %s537
              %p534 = scmp.ge.s32.totalorder %s533, 1
              %s538 = sphi %s524, %s524
              %s539 = sphi %s525, %s525
            $region257: #{tpu_custom_call.1} parent=253 // loop_header_branch
              %536 = sbr.rel (%p534) target = $region261
            $region258: #{tpu_custom_call.1} parent=253 // loop_body
              %v540 = vld [vmem:[%s538] sm:%s531]
              %541 = vst [vmem:[%s539] sm:%s531] %v540
            $region259: #{tpu_custom_call.1} parent=253 // loop_footer
              %s537 = sadd.s32 1, %s533
            $region260: #{tpu_custom_call.1} parent=253 // loop_footer_branch
              %532 = sbr.rel target = $region256
            $region261: #{tpu_custom_call.1} parent=253 // loop_exit
              _
          $region254: #{tpu_custom_call.1} parent=35 // pred_fallthru
            _
          // Predicated region
          $region273: #{tpu_custom_call.1} parent=35 // pred_check
            _
          $region274: #{tpu_custom_call.1} parent=35 // pred_check_branch
            %558 = sbr.rel (0) target = $region276
          $region275: #{tpu_custom_call.1} parent=35 // pred_region
            %559 = vsyncadd [#allocation3], 16
          $region276: #{tpu_custom_call.1} parent=35 // pred_fallthru
            _
        $region36: #{tpu_custom_call.1} parent=31 // pred_fallthru
          _
        %s560 = sadd.s32 %s32, 1
        %p561 = scmp.lt.s32.totalorder %s560, 2
        // Predicated region
        $region277: #{tpu_custom_call.1} parent=31 // pred_check
          %p562 = pneg %p561
        $region278: #{tpu_custom_call.1} parent=31 // pred_check_branch
          %564 = sbr.rel (%p562) target = $region280
        $region279: #{tpu_custom_call.1} parent=31 // pred_region
          %s565 = smul.u32 %s31, 2
          %s566 = sadd.s32 %s565, %s32
          %s567 = sadd.s32 %s566, 1
          %s568 = ssub.s32 1, %s188
          %s569 = smul.u32 %s567, 8
          %p570 = scmp.lt.s32.totalorder %s569, 29
          %s571 = scalar_select %p570, %s569, 29
          %s572 = sld [smem:[#allocation5 + %s571]]
          %p573 = scmp.gt.s32.totalorder %s572, 0
          %s574 = scalar_select %p573, %s572, 0
          %p575 = scmp.lt.s32.totalorder %s574, 9
          %s576 = scalar_select %p575, %s574, 9
          %s577 = smul.u32 %s571, 16
          %s578 = sadd.s32 %s576, %s577
          %s579 = scalar_lea.vmem %s1, %s578
          %s580 = smul.u32 %s568, 8
          %s581 = scalar_lea.vmem [#allocation2], %s580
          %s582 = scalar_lea.sflag [#allocation3], %s568
          // Predicated region
          $region281: #{tpu_custom_call.1} parent=279 // pred_check
            _
          $region282: #{tpu_custom_call.1} parent=279 // pred_check_branch
            %584 = sbr.rel target = $region284
          $region283: #{tpu_custom_call.1} parent=279 // pred_region
            // Predicated region
            $region296: #{tpu_custom_call.1} parent=283 // pred_check
              _
            $region297: #{tpu_custom_call.1} parent=283 // pred_check_branch
              %600 = sbr.rel (0) target = $region299
            $region298: #{tpu_custom_call.1} parent=283 // pred_region
              %s602 = ssub.s32 2, 1
              loop: start=0, step=1, limit=1
              $region300: #{tpu_custom_call.1} parent=298 // loop_pre_header
                _
              $region301: #{tpu_custom_call.1} parent=298 // loop_header
                %s604 = sphi 0, %s608
                %p605 = scmp.ge.s32.totalorder %s604, 1
                %s609 = sphi %s579, %s579
                %s610 = sphi %s581, %s581
              $region302: #{tpu_custom_call.1} parent=298 // loop_header_branch
                %607 = sbr.rel (%p605) target = $region306
              $region303: #{tpu_custom_call.1} parent=298 // loop_body
                %v611 = vld [vmem:[%s609] sm:%s602]
                %612 = vst [vmem:[%s610] sm:%s602] %v611
              $region304: #{tpu_custom_call.1} parent=298 // loop_footer
                %s608 = sadd.s32 1, %s604
              $region305: #{tpu_custom_call.1} parent=298 // loop_footer_branch
                %603 = sbr.rel target = $region301
              $region306: #{tpu_custom_call.1} parent=298 // loop_exit
                _
            $region299: #{tpu_custom_call.1} parent=283 // pred_fallthru
              _
          $region284: #{tpu_custom_call.1} parent=279 // pred_fallthru
            _
          // Predicated region
          $region285: #{tpu_custom_call.1} parent=279 // pred_check
            _
          $region286: #{tpu_custom_call.1} parent=279 // pred_check_branch
            %586 = sbr.rel (0) target = $region288
          $region287: #{tpu_custom_call.1} parent=279 // pred_region
            %s588 = ssub.s32 2, 1
            loop: start=0, step=1, limit=1
            $region289: #{tpu_custom_call.1} parent=287 // loop_pre_header
              _
            $region290: #{tpu_custom_call.1} parent=287 // loop_header
              %s590 = sphi 0, %s594
              %p591 = scmp.ge.s32.totalorder %s590, 1
              %s595 = sphi %s579, %s579
              %s596 = sphi %s581, %s581
            $region291: #{tpu_custom_call.1} parent=287 // loop_header_branch
              %593 = sbr.rel (%p591) target = $region295
            $region292: #{tpu_custom_call.1} parent=287 // loop_body
              %v597 = vld [vmem:[%s595] sm:%s588]
              %598 = vst [vmem:[%s596] sm:%s588] %v597
            $region293: #{tpu_custom_call.1} parent=287 // loop_footer
              %s594 = sadd.s32 1, %s590
            $region294: #{tpu_custom_call.1} parent=287 // loop_footer_branch
              %589 = sbr.rel target = $region290
            $region295: #{tpu_custom_call.1} parent=287 // loop_exit
              _
          $region288: #{tpu_custom_call.1} parent=279 // pred_fallthru
            _
          // Predicated region
          $region307: #{tpu_custom_call.1} parent=279 // pred_check
            _
          $region308: #{tpu_custom_call.1} parent=279 // pred_check_branch
            %615 = sbr.rel (0) target = $region310
          $region309: #{tpu_custom_call.1} parent=279 // pred_region
            %616 = vsyncadd %s582, 16
          $region310: #{tpu_custom_call.1} parent=279 // pred_fallthru
            _
          %s617 = sadd.s32 %s569, 1
          %p618 = scmp.lt.s32.totalorder %s617, 29
          %s619 = scalar_select %p618, %s617, 29
          %s620 = sld [smem:[#allocation5 + %s619]]
          %p621 = scmp.gt.s32.totalorder %s620, 0
          %s622 = scalar_select %p621, %s620, 0
          %p623 = scmp.lt.s32.totalorder %s622, 9
          %s624 = scalar_select %p623, %s622, 9
          %s625 = smul.u32 %s619, 16
          %s626 = sadd.s32 %s624, %s625
          %s627 = scalar_lea.vmem %s1, %s626
          %s628 = sadd.s32 1, %s580
          %s629 = scalar_lea.vmem [#allocation2], %s628
          // Predicated region
          $region311: #{tpu_custom_call.1} parent=279 // pred_check
            _
          $region312: #{tpu_custom_call.1} parent=279 // pred_check_branch
            %631 = sbr.rel target = $region314
          $region313: #{tpu_custom_call.1} parent=279 // pred_region
            // Predicated region
            $region326: #{tpu_custom_call.1} parent=313 // pred_check
              _
            $region327: #{tpu_custom_call.1} parent=313 // pred_check_branch
              %647 = sbr.rel (0) target = $region329
            $region328: #{tpu_custom_call.1} parent=313 // pred_region
              %s649 = ssub.s32 2, 1
              loop: start=0, step=1, limit=1
              $region330: #{tpu_custom_call.1} parent=328 // loop_pre_header
                _
              $region331: #{tpu_custom_call.1} parent=328 // loop_header
                %s651 = sphi 0, %s655
                %p652 = scmp.ge.s32.totalorder %s651, 1
                %s656 = sphi %s627, %s627
                %s657 = sphi %s629, %s629
              $region332: #{tpu_custom_call.1} parent=328 // loop_header_branch
                %654 = sbr.rel (%p652) target = $region336
              $region333: #{tpu_custom_call.1} parent=328 // loop_body
                %v658 = vld [vmem:[%s656] sm:%s649]
                %659 = vst [vmem:[%s657] sm:%s649] %v658
              $region334: #{tpu_custom_call.1} parent=328 // loop_footer
                %s655 = sadd.s32 1, %s651
              $region335: #{tpu_custom_call.1} parent=328 // loop_footer_branch
                %650 = sbr.rel target = $region331
              $region336: #{tpu_custom_call.1} parent=328 // loop_exit
                _
            $region329: #{tpu_custom_call.1} parent=313 // pred_fallthru
              _
          $region314: #{tpu_custom_call.1} parent=279 // pred_fallthru
            _
          // Predicated region
          $region315: #{tpu_custom_call.1} parent=279 // pred_check
            _
          $region316: #{tpu_custom_call.1} parent=279 // pred_check_branch
            %633 = sbr.rel (0) target = $region318
          $region317: #{tpu_custom_call.1} parent=279 // pred_region
            %s635 = ssub.s32 2, 1
            loop: start=0, step=1, limit=1
            $region319: #{tpu_custom_call.1} parent=317 // loop_pre_header
              _
            $region320: #{tpu_custom_call.1} parent=317 // loop_header
              %s637 = sphi 0, %s641
              %p638 = scmp.ge.s32.totalorder %s637, 1
              %s642 = sphi %s627, %s627
              %s643 = sphi %s629, %s629
            $region321: #{tpu_custom_call.1} parent=317 // loop_header_branch
              %640 = sbr.rel (%p638) target = $region325
            $region322: #{tpu_custom_call.1} parent=317 // loop_body
              %v644 = vld [vmem:[%s642] sm:%s635]
              %645 = vst [vmem:[%s643] sm:%s635] %v644
            $region323: #{tpu_custom_call.1} parent=317 // loop_footer
              %s641 = sadd.s32 1, %s637
            $region324: #{tpu_custom_call.1} parent=317 // loop_footer_branch
              %636 = sbr.rel target = $region320
            $region325: #{tpu_custom_call.1} parent=317 // loop_exit
              _
          $region318: #{tpu_custom_call.1} parent=279 // pred_fallthru
            _
          // Predicated region
          $region337: #{tpu_custom_call.1} parent=279 // pred_check
            _
          $region338: #{tpu_custom_call.1} parent=279 // pred_check_branch
            %662 = sbr.rel (0) target = $region340
          $region339: #{tpu_custom_call.1} parent=279 // pred_region
            %663 = vsyncadd %s582, 16
          $region340: #{tpu_custom_call.1} parent=279 // pred_fallthru
            _
          %s664 = sadd.s32 %s569, 2
          %p665 = scmp.lt.s32.totalorder %s664, 29
          %s666 = scalar_select %p665, %s664, 29
          %s667 = sld [smem:[#allocation5 + %s666]]
          %p668 = scmp.gt.s32.totalorder %s667, 0
          %s669 = scalar_select %p668, %s667, 0
          %p670 = scmp.lt.s32.totalorder %s669, 9
          %s671 = scalar_select %p670, %s669, 9
          %s672 = smul.u32 %s666, 16
          %s673 = sadd.s32 %s671, %s672
          %s674 = scalar_lea.vmem %s1, %s673
          %s675 = sadd.s32 2, %s580
          %s676 = scalar_lea.vmem [#allocation2], %s675
          // Predicated region
          $region341: #{tpu_custom_call.1} parent=279 // pred_check
            _
          $region342: #{tpu_custom_call.1} parent=279 // pred_check_branch
            %678 = sbr.rel target = $region344
          $region343: #{tpu_custom_call.1} parent=279 // pred_region
            // Predicated region
            $region356: #{tpu_custom_call.1} parent=343 // pred_check
              _
            $region357: #{tpu_custom_call.1} parent=343 // pred_check_branch
              %694 = sbr.rel (0) target = $region359
            $region358: #{tpu_custom_call.1} parent=343 // pred_region
              %s696 = ssub.s32 2, 1
              loop: start=0, step=1, limit=1
              $region360: #{tpu_custom_call.1} parent=358 // loop_pre_header
                _
              $region361: #{tpu_custom_call.1} parent=358 // loop_header
                %s698 = sphi 0, %s702
                %p699 = scmp.ge.s32.totalorder %s698, 1
                %s703 = sphi %s674, %s674
                %s704 = sphi %s676, %s676
              $region362: #{tpu_custom_call.1} parent=358 // loop_header_branch
                %701 = sbr.rel (%p699) target = $region366
              $region363: #{tpu_custom_call.1} parent=358 // loop_body
                %v705 = vld [vmem:[%s703] sm:%s696]
                %706 = vst [vmem:[%s704] sm:%s696] %v705
              $region364: #{tpu_custom_call.1} parent=358 // loop_footer
                %s702 = sadd.s32 1, %s698
              $region365: #{tpu_custom_call.1} parent=358 // loop_footer_branch
                %697 = sbr.rel target = $region361
              $region366: #{tpu_custom_call.1} parent=358 // loop_exit
                _
            $region359: #{tpu_custom_call.1} parent=343 // pred_fallthru
              _
          $region344: #{tpu_custom_call.1} parent=279 // pred_fallthru
            _
          // Predicated region
          $region345: #{tpu_custom_call.1} parent=279 // pred_check
            _
          $region346: #{tpu_custom_call.1} parent=279 // pred_check_branch
            %680 = sbr.rel (0) target = $region348
          $region347: #{tpu_custom_call.1} parent=279 // pred_region
            %s682 = ssub.s32 2, 1
            loop: start=0, step=1, limit=1
            $region349: #{tpu_custom_call.1} parent=347 // loop_pre_header
              _
            $region350: #{tpu_custom_call.1} parent=347 // loop_header
              %s684 = sphi 0, %s688
              %p685 = scmp.ge.s32.totalorder %s684, 1
              %s689 = sphi %s674, %s674
              %s690 = sphi %s676, %s676
            $region351: #{tpu_custom_call.1} parent=347 // loop_header_branch
              %687 = sbr.rel (%p685) target = $region355
            $region352: #{tpu_custom_call.1} parent=347 // loop_body
              %v691 = vld [vmem:[%s689] sm:%s682]
              %692 = vst [vmem:[%s690] sm:%s682] %v691
            $region353: #{tpu_custom_call.1} parent=347 // loop_footer
              %s688 = sadd.s32 1, %s684
            $region354: #{tpu_custom_call.1} parent=347 // loop_footer_branch
              %683 = sbr.rel target = $region350
            $region355: #{tpu_custom_call.1} parent=347 // loop_exit
              _
          $region348: #{tpu_custom_call.1} parent=279 // pred_fallthru
            _
          // Predicated region
          $region367: #{tpu_custom_call.1} parent=279 // pred_check
            _
          $region368: #{tpu_custom_call.1} parent=279 // pred_check_branch
            %709 = sbr.rel (0) target = $region370
          $region369: #{tpu_custom_call.1} parent=279 // pred_region
            %710 = vsyncadd %s582, 16
          $region370: #{tpu_custom_call.1} parent=279 // pred_fallthru
            _
          %s711 = sadd.s32 %s569, 3
          %p712 = scmp.lt.s32.totalorder %s711, 29
          %s713 = scalar_select %p712, %s711, 29
          %s714 = sld [smem:[#allocation5 + %s713]]
          %p715 = scmp.gt.s32.totalorder %s714, 0
          %s716 = scalar_select %p715, %s714, 0
          %p717 = scmp.lt.s32.totalorder %s716, 9
          %s718 = scalar_select %p717, %s716, 9
          %s719 = smul.u32 %s713, 16
          %s720 = sadd.s32 %s718, %s719
          %s721 = scalar_lea.vmem %s1, %s720
          %s722 = sadd.s32 3, %s580
          %s723 = scalar_lea.vmem [#allocation2], %s722
          // Predicated region
          $region371: #{tpu_custom_call.1} parent=279 // pred_check
            _
          $region372: #{tpu_custom_call.1} parent=279 // pred_check_branch
            %725 = sbr.rel target = $region374
          $region373: #{tpu_custom_call.1} parent=279 // pred_region
            // Predicated region
            $region386: #{tpu_custom_call.1} parent=373 // pred_check
              _
            $region387: #{tpu_custom_call.1} parent=373 // pred_check_branch
              %741 = sbr.rel (0) target = $region389
            $region388: #{tpu_custom_call.1} parent=373 // pred_region
              %s743 = ssub.s32 2, 1
              loop: start=0, step=1, limit=1
              $region390: #{tpu_custom_call.1} parent=388 // loop_pre_header
                _
              $region391: #{tpu_custom_call.1} parent=388 // loop_header
                %s745 = sphi 0, %s749
                %p746 = scmp.ge.s32.totalorder %s745, 1
                %s750 = sphi %s721, %s721
                %s751 = sphi %s723, %s723
              $region392: #{tpu_custom_call.1} parent=388 // loop_header_branch
                %748 = sbr.rel (%p746) target = $region396
              $region393: #{tpu_custom_call.1} parent=388 // loop_body
                %v752 = vld [vmem:[%s750] sm:%s743]
                %753 = vst [vmem:[%s751] sm:%s743] %v752
              $region394: #{tpu_custom_call.1} parent=388 // loop_footer
                %s749 = sadd.s32 1, %s745
              $region395: #{tpu_custom_call.1} parent=388 // loop_footer_branch
                %744 = sbr.rel target = $region391
              $region396: #{tpu_custom_call.1} parent=388 // loop_exit
                _
            $region389: #{tpu_custom_call.1} parent=373 // pred_fallthru
              _
          $region374: #{tpu_custom_call.1} parent=279 // pred_fallthru
            _
          // Predicated region
          $region375: #{tpu_custom_call.1} parent=279 // pred_check
            _
          $region376: #{tpu_custom_call.1} parent=279 // pred_check_branch
            %727 = sbr.rel (0) target = $region378
          $region377: #{tpu_custom_call.1} parent=279 // pred_region
            %s729 = ssub.s32 2, 1
            loop: start=0, step=1, limit=1
            $region379: #{tpu_custom_call.1} parent=377 // loop_pre_header
              _
            $region380: #{tpu_custom_call.1} parent=377 // loop_header
              %s731 = sphi 0, %s735
              %p732 = scmp.ge.s32.totalorder %s731, 1
              %s736 = sphi %s721, %s721
              %s737 = sphi %s723, %s723
            $region381: #{tpu_custom_call.1} parent=377 // loop_header_branch
              %734 = sbr.rel (%p732) target = $region385
            $region382: #{tpu_custom_call.1} parent=377 // loop_body
              %v738 = vld [vmem:[%s736] sm:%s729]
              %739 = vst [vmem:[%s737] sm:%s729] %v738
            $region383: #{tpu_custom_call.1} parent=377 // loop_footer
              %s735 = sadd.s32 1, %s731
            $region384: #{tpu_custom_call.1} parent=377 // loop_footer_branch
              %730 = sbr.rel target = $region380
            $region385: #{tpu_custom_call.1} parent=377 // loop_exit
              _
          $region378: #{tpu_custom_call.1} parent=279 // pred_fallthru
            _
          // Predicated region
          $region397: #{tpu_custom_call.1} parent=279 // pred_check
            _
          $region398: #{tpu_custom_call.1} parent=279 // pred_check_branch
            %756 = sbr.rel (0) target = $region400
          $region399: #{tpu_custom_call.1} parent=279 // pred_region
            %757 = vsyncadd %s582, 16
          $region400: #{tpu_custom_call.1} parent=279 // pred_fallthru
            _
          %s758 = sadd.s32 %s569, 4
          %p759 = scmp.lt.s32.totalorder %s758, 29
          %s760 = scalar_select %p759, %s758, 29
          %s761 = sld [smem:[#allocation5 + %s760]]
          %p762 = scmp.gt.s32.totalorder %s761, 0
          %s763 = scalar_select %p762, %s761, 0
          %p764 = scmp.lt.s32.totalorder %s763, 9
          %s765 = scalar_select %p764, %s763, 9
          %s766 = smul.u32 %s760, 16
          %s767 = sadd.s32 %s765, %s766
          %s768 = scalar_lea.vmem %s1, %s767
          %s769 = sadd.s32 4, %s580
          %s770 = scalar_lea.vmem [#allocation2], %s769
          // Predicated region
          $region401: #{tpu_custom_call.1} parent=279 // pred_check
            _
          $region402: #{tpu_custom_call.1} parent=279 // pred_check_branch
            %772 = sbr.rel target = $region404
          $region403: #{tpu_custom_call.1} parent=279 // pred_region
            // Predicated region
            $region416: #{tpu_custom_call.1} parent=403 // pred_check
              _
            $region417: #{tpu_custom_call.1} parent=403 // pred_check_branch
              %788 = sbr.rel (0) target = $region419
            $region418: #{tpu_custom_call.1} parent=403 // pred_region
              %s790 = ssub.s32 2, 1
              loop: start=0, step=1, limit=1
              $region420: #{tpu_custom_call.1} parent=418 // loop_pre_header
                _
              $region421: #{tpu_custom_call.1} parent=418 // loop_header
                %s792 = sphi 0, %s796
                %p793 = scmp.ge.s32.totalorder %s792, 1
                %s797 = sphi %s768, %s768
                %s798 = sphi %s770, %s770
              $region422: #{tpu_custom_call.1} parent=418 // loop_header_branch
                %795 = sbr.rel (%p793) target = $region426
              $region423: #{tpu_custom_call.1} parent=418 // loop_body
                %v799 = vld [vmem:[%s797] sm:%s790]
                %800 = vst [vmem:[%s798] sm:%s790] %v799
              $region424: #{tpu_custom_call.1} parent=418 // loop_footer
                %s796 = sadd.s32 1, %s792
              $region425: #{tpu_custom_call.1} parent=418 // loop_footer_branch
                %791 = sbr.rel target = $region421
              $region426: #{tpu_custom_call.1} parent=418 // loop_exit
                _
            $region419: #{tpu_custom_call.1} parent=403 // pred_fallthru
              _
          $region404: #{tpu_custom_call.1} parent=279 // pred_fallthru
            _
          // Predicated region
          $region405: #{tpu_custom_call.1} parent=279 // pred_check
            _
          $region406: #{tpu_custom_call.1} parent=279 // pred_check_branch
            %774 = sbr.rel (0) target = $region408
          $region407: #{tpu_custom_call.1} parent=279 // pred_region
            %s776 = ssub.s32 2, 1
            loop: start=0, step=1, limit=1
            $region409: #{tpu_custom_call.1} parent=407 // loop_pre_header
              _
            $region410: #{tpu_custom_call.1} parent=407 // loop_header
              %s778 = sphi 0, %s782
              %p779 = scmp.ge.s32.totalorder %s778, 1
              %s783 = sphi %s768, %s768
              %s784 = sphi %s770, %s770
            $region411: #{tpu_custom_call.1} parent=407 // loop_header_branch
              %781 = sbr.rel (%p779) target = $region415
            $region412: #{tpu_custom_call.1} parent=407 // loop_body
              %v785 = vld [vmem:[%s783] sm:%s776]
              %786 = vst [vmem:[%s784] sm:%s776] %v785
            $region413: #{tpu_custom_call.1} parent=407 // loop_footer
              %s782 = sadd.s32 1, %s778
            $region414: #{tpu_custom_call.1} parent=407 // loop_footer_branch
              %777 = sbr.rel target = $region410
            $region415: #{tpu_custom_call.1} parent=407 // loop_exit
              _
          $region408: #{tpu_custom_call.1} parent=279 // pred_fallthru
            _
          // Predicated region
          $region427: #{tpu_custom_call.1} parent=279 // pred_check
            _
          $region428: #{tpu_custom_call.1} parent=279 // pred_check_branch
            %803 = sbr.rel (0) target = $region430
          $region429: #{tpu_custom_call.1} parent=279 // pred_region
            %804 = vsyncadd %s582, 16
          $region430: #{tpu_custom_call.1} parent=279 // pred_fallthru
            _
          %s805 = sadd.s32 %s569, 5
          %p806 = scmp.lt.s32.totalorder %s805, 29
          %s807 = scalar_select %p806, %s805, 29
          %s808 = sld [smem:[#allocation5 + %s807]]
          %p809 = scmp.gt.s32.totalorder %s808, 0
          %s810 = scalar_select %p809, %s808, 0
          %p811 = scmp.lt.s32.totalorder %s810, 9
          %s812 = scalar_select %p811, %s810, 9
          %s813 = smul.u32 %s807, 16
          %s814 = sadd.s32 %s812, %s813
          %s815 = scalar_lea.vmem %s1, %s814
          %s816 = sadd.s32 5, %s580
          %s817 = scalar_lea.vmem [#allocation2], %s816
          // Predicated region
          $region431: #{tpu_custom_call.1} parent=279 // pred_check
            _
          $region432: #{tpu_custom_call.1} parent=279 // pred_check_branch
            %819 = sbr.rel target = $region434
          $region433: #{tpu_custom_call.1} parent=279 // pred_region
            // Predicated region
            $region446: #{tpu_custom_call.1} parent=433 // pred_check
              _
            $region447: #{tpu_custom_call.1} parent=433 // pred_check_branch
              %835 = sbr.rel (0) target = $region449
            $region448: #{tpu_custom_call.1} parent=433 // pred_region
              %s837 = ssub.s32 2, 1
              loop: start=0, step=1, limit=1
              $region450: #{tpu_custom_call.1} parent=448 // loop_pre_header
                _
              $region451: #{tpu_custom_call.1} parent=448 // loop_header
                %s839 = sphi 0, %s843
                %p840 = scmp.ge.s32.totalorder %s839, 1
                %s844 = sphi %s815, %s815
                %s845 = sphi %s817, %s817
              $region452: #{tpu_custom_call.1} parent=448 // loop_header_branch
                %842 = sbr.rel (%p840) target = $region456
              $region453: #{tpu_custom_call.1} parent=448 // loop_body
                %v846 = vld [vmem:[%s844] sm:%s837]
                %847 = vst [vmem:[%s845] sm:%s837] %v846
              $region454: #{tpu_custom_call.1} parent=448 // loop_footer
                %s843 = sadd.s32 1, %s839
              $region455: #{tpu_custom_call.1} parent=448 // loop_footer_branch
                %838 = sbr.rel target = $region451
              $region456: #{tpu_custom_call.1} parent=448 // loop_exit
                _
            $region449: #{tpu_custom_call.1} parent=433 // pred_fallthru
              _
          $region434: #{tpu_custom_call.1} parent=279 // pred_fallthru
            _
          // Predicated region
          $region435: #{tpu_custom_call.1} parent=279 // pred_check
            _
          $region436: #{tpu_custom_call.1} parent=279 // pred_check_branch
            %821 = sbr.rel (0) target = $region438
          $region437: #{tpu_custom_call.1} parent=279 // pred_region
            %s823 = ssub.s32 2, 1
            loop: start=0, step=1, limit=1
            $region439: #{tpu_custom_call.1} parent=437 // loop_pre_header
              _
            $region440: #{tpu_custom_call.1} parent=437 // loop_header
              %s825 = sphi 0, %s829
              %p826 = scmp.ge.s32.totalorder %s825, 1
              %s830 = sphi %s815, %s815
              %s831 = sphi %s817, %s817
            $region441: #{tpu_custom_call.1} parent=437 // loop_header_branch
              %828 = sbr.rel (%p826) target = $region445
            $region442: #{tpu_custom_call.1} parent=437 // loop_body
              %v832 = vld [vmem:[%s830] sm:%s823]
              %833 = vst [vmem:[%s831] sm:%s823] %v832
            $region443: #{tpu_custom_call.1} parent=437 // loop_footer
              %s829 = sadd.s32 1, %s825
            $region444: #{tpu_custom_call.1} parent=437 // loop_footer_branch
              %824 = sbr.rel target = $region440
            $region445: #{tpu_custom_call.1} parent=437 // loop_exit
              _
          $region438: #{tpu_custom_call.1} parent=279 // pred_fallthru
            _
          // Predicated region
          $region457: #{tpu_custom_call.1} parent=279 // pred_check
            _
          $region458: #{tpu_custom_call.1} parent=279 // pred_check_branch
            %850 = sbr.rel (0) target = $region460
          $region459: #{tpu_custom_call.1} parent=279 // pred_region
            %851 = vsyncadd %s582, 16
          $region460: #{tpu_custom_call.1} parent=279 // pred_fallthru
            _
          %s852 = sadd.s32 %s569, 6
          %p853 = scmp.lt.s32.totalorder %s852, 29
          %s854 = scalar_select %p853, %s852, 29
          %s855 = sld [smem:[#allocation5 + %s854]]
          %p856 = scmp.gt.s32.totalorder %s855, 0
          %s857 = scalar_select %p856, %s855, 0
          %p858 = scmp.lt.s32.totalorder %s857, 9
          %s859 = scalar_select %p858, %s857, 9
          %s860 = smul.u32 %s854, 16
          %s861 = sadd.s32 %s859, %s860
          %s862 = scalar_lea.vmem %s1, %s861
          %s863 = sadd.s32 6, %s580
          %s864 = scalar_lea.vmem [#allocation2], %s863
          // Predicated region
          $region461: #{tpu_custom_call.1} parent=279 // pred_check
            _
          $region462: #{tpu_custom_call.1} parent=279 // pred_check_branch
            %866 = sbr.rel target = $region464
          $region463: #{tpu_custom_call.1} parent=279 // pred_region
            // Predicated region
            $region476: #{tpu_custom_call.1} parent=463 // pred_check
              _
            $region477: #{tpu_custom_call.1} parent=463 // pred_check_branch
              %882 = sbr.rel (0) target = $region479
            $region478: #{tpu_custom_call.1} parent=463 // pred_region
              %s884 = ssub.s32 2, 1
              loop: start=0, step=1, limit=1
              $region480: #{tpu_custom_call.1} parent=478 // loop_pre_header
                _
              $region481: #{tpu_custom_call.1} parent=478 // loop_header
                %s886 = sphi 0, %s890
                %p887 = scmp.ge.s32.totalorder %s886, 1
                %s891 = sphi %s862, %s862
                %s892 = sphi %s864, %s864
              $region482: #{tpu_custom_call.1} parent=478 // loop_header_branch
                %889 = sbr.rel (%p887) target = $region486
              $region483: #{tpu_custom_call.1} parent=478 // loop_body
                %v893 = vld [vmem:[%s891] sm:%s884]
                %894 = vst [vmem:[%s892] sm:%s884] %v893
              $region484: #{tpu_custom_call.1} parent=478 // loop_footer
                %s890 = sadd.s32 1, %s886
              $region485: #{tpu_custom_call.1} parent=478 // loop_footer_branch
                %885 = sbr.rel target = $region481
              $region486: #{tpu_custom_call.1} parent=478 // loop_exit
                _
            $region479: #{tpu_custom_call.1} parent=463 // pred_fallthru
              _
          $region464: #{tpu_custom_call.1} parent=279 // pred_fallthru
            _
          // Predicated region
          $region465: #{tpu_custom_call.1} parent=279 // pred_check
            _
          $region466: #{tpu_custom_call.1} parent=279 // pred_check_branch
            %868 = sbr.rel (0) target = $region468
          $region467: #{tpu_custom_call.1} parent=279 // pred_region
            %s870 = ssub.s32 2, 1
            loop: start=0, step=1, limit=1
            $region469: #{tpu_custom_call.1} parent=467 // loop_pre_header
              _
            $region470: #{tpu_custom_call.1} parent=467 // loop_header
              %s872 = sphi 0, %s876
              %p873 = scmp.ge.s32.totalorder %s872, 1
              %s877 = sphi %s862, %s862
              %s878 = sphi %s864, %s864
            $region471: #{tpu_custom_call.1} parent=467 // loop_header_branch
              %875 = sbr.rel (%p873) target = $region475
            $region472: #{tpu_custom_call.1} parent=467 // loop_body
              %v879 = vld [vmem:[%s877] sm:%s870]
              %880 = vst [vmem:[%s878] sm:%s870] %v879
            $region473: #{tpu_custom_call.1} parent=467 // loop_footer
              %s876 = sadd.s32 1, %s872
            $region474: #{tpu_custom_call.1} parent=467 // loop_footer_branch
              %871 = sbr.rel target = $region470
            $region475: #{tpu_custom_call.1} parent=467 // loop_exit
              _
          $region468: #{tpu_custom_call.1} parent=279 // pred_fallthru
            _
          // Predicated region
          $region487: #{tpu_custom_call.1} parent=279 // pred_check
            _
          $region488: #{tpu_custom_call.1} parent=279 // pred_check_branch
            %897 = sbr.rel (0) target = $region490
          $region489: #{tpu_custom_call.1} parent=279 // pred_region
            %898 = vsyncadd %s582, 16
          $region490: #{tpu_custom_call.1} parent=279 // pred_fallthru
            _
          %s899 = sadd.s32 %s569, 7
          %p900 = scmp.lt.s32.totalorder %s899, 29
          %s901 = scalar_select %p900, %s899, 29
          %s902 = sld [smem:[#allocation5 + %s901]]
          %p903 = scmp.gt.s32.totalorder %s902, 0
          %s904 = scalar_select %p903, %s902, 0
          %p905 = scmp.lt.s32.totalorder %s904, 9
          %s906 = scalar_select %p905, %s904, 9
          %s907 = smul.u32 %s901, 16
          %s908 = sadd.s32 %s906, %s907
          %s909 = scalar_lea.vmem %s1, %s908
          %s910 = sadd.s32 7, %s580
          %s911 = scalar_lea.vmem [#allocation2], %s910
          // Predicated region
          $region491: #{tpu_custom_call.1} parent=279 // pred_check
            _
          $region492: #{tpu_custom_call.1} parent=279 // pred_check_branch
            %913 = sbr.rel target = $region494
          $region493: #{tpu_custom_call.1} parent=279 // pred_region
            // Predicated region
            $region506: #{tpu_custom_call.1} parent=493 // pred_check
              _
            $region507: #{tpu_custom_call.1} parent=493 // pred_check_branch
              %929 = sbr.rel (0) target = $region509
            $region508: #{tpu_custom_call.1} parent=493 // pred_region
              %s931 = ssub.s32 2, 1
              loop: start=0, step=1, limit=1
              $region510: #{tpu_custom_call.1} parent=508 // loop_pre_header
                _
              $region511: #{tpu_custom_call.1} parent=508 // loop_header
                %s933 = sphi 0, %s937
                %p934 = scmp.ge.s32.totalorder %s933, 1
                %s938 = sphi %s909, %s909
                %s939 = sphi %s911, %s911
              $region512: #{tpu_custom_call.1} parent=508 // loop_header_branch
                %936 = sbr.rel (%p934) target = $region516
              $region513: #{tpu_custom_call.1} parent=508 // loop_body
                %v940 = vld [vmem:[%s938] sm:%s931]
                %941 = vst [vmem:[%s939] sm:%s931] %v940
              $region514: #{tpu_custom_call.1} parent=508 // loop_footer
                %s937 = sadd.s32 1, %s933
              $region515: #{tpu_custom_call.1} parent=508 // loop_footer_branch
                %932 = sbr.rel target = $region511
              $region516: #{tpu_custom_call.1} parent=508 // loop_exit
                _
            $region509: #{tpu_custom_call.1} parent=493 // pred_fallthru
              _
          $region494: #{tpu_custom_call.1} parent=279 // pred_fallthru
            _
          // Predicated region
          $region495: #{tpu_custom_call.1} parent=279 // pred_check
            _
          $region496: #{tpu_custom_call.1} parent=279 // pred_check_branch
            %915 = sbr.rel (0) target = $region498
          $region497: #{tpu_custom_call.1} parent=279 // pred_region
            %s917 = ssub.s32 2, 1
            loop: start=0, step=1, limit=1
            $region499: #{tpu_custom_call.1} parent=497 // loop_pre_header
              _
            $region500: #{tpu_custom_call.1} parent=497 // loop_header
              %s919 = sphi 0, %s923
              %p920 = scmp.ge.s32.totalorder %s919, 1
              %s924 = sphi %s909, %s909
              %s925 = sphi %s911, %s911
            $region501: #{tpu_custom_call.1} parent=497 // loop_header_branch
              %922 = sbr.rel (%p920) target = $region505
            $region502: #{tpu_custom_call.1} parent=497 // loop_body
              %v926 = vld [vmem:[%s924] sm:%s917]
              %927 = vst [vmem:[%s925] sm:%s917] %v926
            $region503: #{tpu_custom_call.1} parent=497 // loop_footer
              %s923 = sadd.s32 1, %s919
            $region504: #{tpu_custom_call.1} parent=497 // loop_footer_branch
              %918 = sbr.rel target = $region500
            $region505: #{tpu_custom_call.1} parent=497 // loop_exit
              _
          $region498: #{tpu_custom_call.1} parent=279 // pred_fallthru
            _
          // Predicated region
          $region517: #{tpu_custom_call.1} parent=279 // pred_check
            _
          $region518: #{tpu_custom_call.1} parent=279 // pred_check_branch
            %944 = sbr.rel (0) target = $region520
          $region519: #{tpu_custom_call.1} parent=279 // pred_region
            %945 = vsyncadd %s582, 16
          $region520: #{tpu_custom_call.1} parent=279 // pred_fallthru
            _
        $region280: #{tpu_custom_call.1} parent=31 // pred_fallthru
          _
        %s946 = smul.u32 %s188, 8
        %s947 = scalar_lea.vmem [#allocation2], %s946
        %s948 = scalar_lea.sflag [#allocation3], %s188
        %s949 = smul.u32 8, 1
        %s950 = sshll.u32 %s949, 4
        %951 = dma.done %s948, %s950
        %v952 = vld [vmem:[%s947] sm:$0xff]
        %953 = vadd.xlane.f32.xlu0 %v952
        %v954 = vpop.xlane.xlu0 %953
        %v955 = vrcp.pop 128.0
        %v956 = vmul.f32 128.0, %v955
        %v957 = vsub.f32 1.0, %v956
        %v958 = vmul.f32 %v955, %v957
        %v959 = vadd.f32 %v955, %v958
        %vm960 = vweird.f32 %v955
        %v961 = vsel %vm960, %v955, %v959
        %v962 = vmul.f32 %v954, %v961
        %v963 = vmul.f32 %v952, %v952
        %964 = vadd.xlane.f32.xlu0 %v963
        %v965 = vpop.xlane.xlu0 %964
        %v966 = vmul.f32 %v965, %v961
        %v967 = vmul.f32 %v962, %v962
        %v968 = vsub.f32 %v966, %v967
        %v969 = vadd.f32 %v968, 1e-05
        %v970 = vrsqrt.pop %v969
        %v971 = vmul.f32 %v970, %v969
        %v972 = vmul.f32 %v971, %v970
        %v973 = vmul.f32 0.5, %v972
        %v974 = vsub.f32 1.5, %v973
        %v975 = vmul.f32 %v970, %v974
        %vm976 = vweird.f32 %v969
        %vm977 = vweird.f32 %v970
        %vm978 = vmor %vm976, %vm977
        %v979 = vsel %vm978, %v970, %v975
        %v980 = vsub.f32 %v952, %v962
        %v981 = vmul.f32 %v980, %v979
        %v982 = vld [vmem:[%s2] sm:$0x1]
        %v984 = vperm.slane %v982, 0
        %v986 = vmul.f32 %v981, %v984
        %v987 = vld [vmem:[%s3] sm:$0x1]
        %v989 = vperm.slane %v987, 0
        %v991 = vadd.f32 %v986, %v989
        %v992 = vld [vmem:[%s4] sm:$0xff]
        %v993 = vld [vmem:[%s4 + $0x8] sm:$0xff]
        %v994 = vld [vmem:[%s4 + $0x10] sm:$0xff]
        %v995 = vld [vmem:[%s4 + $0x18] sm:$0xff]
        %v996 = vld [vmem:[%s4 + $0x20] sm:$0xff]
        %v997 = vld [vmem:[%s4 + $0x28] sm:$0xff]
        %v998 = vld [vmem:[%s4 + $0x30] sm:$0xff]
        %v999 = vld [vmem:[%s4 + $0x38] sm:$0xff]
        %v1000 = vld [vmem:[%s4 + $0x40] sm:$0xff]
        %v1001 = vld [vmem:[%s4 + $0x48] sm:$0xff]
        %v1002 = vld [vmem:[%s4 + $0x50] sm:$0xff]
        %v1003 = vld [vmem:[%s4 + $0x58] sm:$0xff]
        %v1004 = vld [vmem:[%s4 + $0x60] sm:$0xff]
        %v1005 = vld [vmem:[%s4 + $0x68] sm:$0xff]
        %v1006 = vld [vmem:[%s4 + $0x70] sm:$0xff]
        %v1007 = vld [vmem:[%s4 + $0x78] sm:$0xff]
        %1008 = vmatpush.msra.mxu0 %v1007
        %1009 = vmatpush.msra.mxu0 %v1006
        %1010 = vmatpush.msra.mxu0 %v1005
        %1011 = vmatpush.msra.mxu0 %v1004
        %1012 = vmatpush.msra.mxu0 %v1003
        %1013 = vmatpush.msra.mxu0 %v1002
        %1014 = vmatpush.msra.mxu0 %v1001
        %1015 = vmatpush.msra.mxu0 %v1000
        %1016 = vmatpush.msra.mxu0 %v999
        %1017 = vmatpush.msra.mxu0 %v998
        %1018 = vmatpush.msra.mxu0 %v997
        %1019 = vmatpush.msra.mxu0 %v996
        %1020 = vmatpush.msra.mxu0 %v995
        %1021 = vmatpush.msra.mxu0 %v994
        %1022 = vmatpush.msra.mxu0 %v993
        %1023 = vmatpush.msra.mxu0 %v992
        %1024 = vmatmul.f32.gmra.mxu0 %v991
        %v1025 = vpop.f32.mrf.mxu0
        %v1026 = vadd.f32 0.0, %v1025
        %1027 = vdwg.mxu0
        %1028 = vst [vmem:[%s174] sm:$0xff] %v1026
        %s1029 = sand.u32 %s114, 1
        %s1030 = scalar_lea.sflag [#allocation7], %s1029
        %s1031 = sand.u32 %s114, 1
        %s1032 = smul.addr %s1031, 8
        %s1033 = scalar_lea.vmem [#allocation6], %s1032
        // Predicated region
        $region521: #{tpu_custom_call.1} parent=31 // pred_check
          %p1034 = pneg %p124
        $region522: #{tpu_custom_call.1} parent=31 // pred_check_branch
          %1036 = sbr.rel (%p1034) target = $region524
        $region523: #{tpu_custom_call.1} parent=31 // pred_region
          %s1037 = smul.u32 %s31, 2
          %s1038 = sadd.s32 %s1037, %s32
          %1040 = vsyncadd %s1030, 0
          %s1041 = smul.addr %s1038, 8
          %s1042 = scalar_lea.hbm %s5, %s1041
          %s1044 = sshll.u32 %s1033, 4
          %s1045 = int_to_ptr.vmem [resolvable:$true] %s1044
          %s1046 = sshll.u32 %s1042, 4
          %s1047 = int_to_ptr.hbm [resolvable:$true] %s1046
          %1049 = dma.vmem_to_hbm [thread:$0]  %s1045, 128, %s1047, %s1030
        $region524: #{tpu_custom_call.1} parent=31 // pred_fallthru
          _
      $region32: #{tpu_custom_call.1} parent=5 // pred_fallthru
        _
      %p1050 = scmp.le.s32.totalorder 2, %s22
      // Predicated region
      $region525: #{tpu_custom_call.1} parent=5 // pred_check
        %p1051 = pneg %p1050
      $region526: #{tpu_custom_call.1} parent=5 // pred_check_branch
        %1053 = sbr.rel (%p1051) target = $region528
      $region527: #{tpu_custom_call.1} parent=5 // pred_region
        %s1054 = ssub.s32 %s22, 2
        // Predicated region
        $region529: #{tpu_custom_call.1} parent=527 // pred_check
          %p1055 = pneg %p130
        $region530: #{tpu_custom_call.1} parent=527 // pred_check_branch
          %1057 = sbr.rel (%p1055) target = $region532
        $region531: #{tpu_custom_call.1} parent=527 // pred_region
          %s1058 = sand.u32 %s115, 1
          %s1059 = scalar_lea.sflag [#allocation7], %s1058
          %s1060 = sand.u32 %s115, 1
          %s1061 = smul.addr %s1060, 8
          %s1062 = scalar_lea.vmem [#allocation6], %s1061
          %1064 = dma.done %s1059, 128
        $region532: #{tpu_custom_call.1} parent=527 // pred_fallthru
          _
      $region528: #{tpu_custom_call.1} parent=5 // pred_fallthru
        _
    $region6: #{tpu_custom_call.1} parent=1 // loop_footer
      %s26 = sadd.s32 1, %s22
    $region7: #{tpu_custom_call.1} parent=1 // loop_footer_branch
      %21 = sbr.rel target = $region3
    $region8: #{tpu_custom_call.1} parent=1 // loop_exit
      _
    %1065 = vsyncpa [#allocation7], 1
    %s1066 = scalar_lea.sflag [#allocation7], 1
    %1067 = vsyncpa %s1066, 1
  %1068 = vsyncmov [#allocation3]
  %s1069 = vpop.sfrf %1068
  %p1070 = scmp.eq.s32.totalorder %s1069, 0
  %p1071 = pneg %p1070
  %1073 = shalt.err (%p1071)
  %s1074 = scalar_lea.sflag [#allocation3], 1
  %1075 = vsyncmov %s1074
  %s1076 = vpop.sfrf %1075
  %p1077 = scmp.eq.s32.totalorder %s1076, 0
  %p1078 = pneg %p1077
  %1080 = shalt.err (%p1078)

</llo_original>
